<compile_context>
chip_gen: v6e
topology: v6e:2x2x1
jax: 0.10.0
libtpu: 0.0.40
codegen_flags: <defaults>
</compile_context>

<pallas_src>
import functools

import jax
import jax.numpy as jnp
from jax.experimental import pallas as pl
from jax.experimental.pallas import tpu as pltpu


def conv_rnn_kernel(T, TB, H, Fp,
                    x_ref, wih_ref, gxb_ref, whh_ref, bhn_ref,
                    wc_ref, bc_ref, w1hb_ref, w1p_ref, b1_ref,
                    w2_ref, b2_ref,
                    out_ref, gx_ref, s_ref):
    f32 = jnp.float32
    bf16 = jnp.bfloat16
    H2, H4, H6 = 2 * H, 4 * H, 6 * H

    # Hoisted bidirectional input projection: one dense (E, 6H) matmul over the
    # single forward-time input stream. Columns are gate-major
    # [r_f r_b | z_f z_b | n_f n_b]; the r/z recurrent biases are pre-folded
    # into gxb, only the n-gate recurrent bias (bhn) stays in the serial step.
    gx_ref[...] = (jnp.dot(x_ref[...], wih_ref[...],
                           preferred_element_type=f32) + gxb_ref[...])

    whh = whh_ref[...]                                        # (2H, 6H) bf16
    bhn = bhn_ref[...]                                        # (1, 2H)  f32

    # Hoisted lane mask selecting the forward-direction columns of the
    # gate-major layout (JAX does not CSE broadcasts -> build once).
    col = jax.lax.broadcasted_iota(jnp.int32, (TB, H6), 1)
    fwd_cols = ((col < H)
                | ((col >= H2) & (col < H2 + H))
                | ((col >= H4) & (col < H4 + H)))

    # Interleaved bidirectional GRU; carry h = [h_fwd(t=i) | h_bwd(t=T-1-i)].
    # T is small here -> fully unrolled static slices.  For T >~ 32 switch to
    # lax.fori_loop with pl.ds(pl.multiple_of(i*TB, TB), TB) indexing.
    h = jnp.zeros((TB, H2), f32)
    for i in range(T):
        g = jnp.where(fwd_cols,
                      gx_ref[i * TB:(i + 1) * TB, :],
                      gx_ref[(T - 1 - i) * TB:(T - i) * TB, :])
        gh = jnp.dot(h.astype(bf16), whh, preferred_element_type=f32)
        rz = jax.nn.sigmoid(g[:, :H4] + gh[:, :H4])           # fused r|z gates
        r = rz[:, :H2]
        z = rz[:, H2:]
        n = jnp.tanh(g[:, H4:] + r * (gh[:, H4:] + bhn))
        h = n + z * (h - n)                                   # == (1-z)*n + z*h
        s_ref[i * TB:(i + 1) * TB, :] = h.astype(bf16)

    # Conv2d(1, F, (1, 2H)) -> relu -> max-pool over time, one fused matmul off
    # the scratch history.  Forward conv half in lanes [0, Fp), backward half
    # in [Fp, 2Fp) so the per-time-step re-pairing is vreg aligned.
    C2 = jnp.dot(s_ref[...], wc_ref[...], preferred_element_type=f32)
    bc = bc_ref[...]
    pooled = None
    for t in range(T):
        cf = C2[t * TB:(t + 1) * TB, :Fp]
        cb = C2[(T - 1 - t) * TB:(T - t) * TB, Fp:]
        ct = jnp.maximum(cf + cb + bc, 0.0)
        pooled = ct if pooled is None else jnp.maximum(pooled, ct)

    # fc1 over concat([h_fwd_final, h_bwd_final, pooled]) done as two matmuls
    # (h is exactly [h_fwd_final | h_bwd_final] by construction of the carry),
    # then relu -> fc2 with lane-dense (Cp = 128) logits store.
    z1 = (jnp.dot(h.astype(bf16), w1hb_ref[...], preferred_element_type=f32)
          + jnp.dot(pooled.astype(bf16), w1p_ref[...],
                    preferred_element_type=f32)
          + b1_ref[...])
    z1 = jnp.maximum(z1, 0.0)
    # TODO(synk): nn.Dropout is identity at inference time; no stochastic mask.
    out_ref[...] = (jnp.dot(z1.astype(bf16), w2_ref[...],
                            preferred_element_type=f32) + b2_ref[...])


def conv_rnn_forward(x_emb, params):
    """x_emb: (B, T, E) float32 embedded input (batch-first, like the module)."""
    B, T, E = x_emb.shape
    H = params["whh_f"].shape[0]
    F = params["wc_f"].shape[1]
    FC = params["w1f"].shape[1]
    C = params["w2"].shape[1]
    Cp = 128                                    # lane-dense logits store
    Fp = ((F + 127) // 128) * 128               # lane-dense conv halves
    TB = min(128, ((B + 15) // 16) * 16)        # batch tile, multiple of 16
    Bp = ((B + TB - 1) // TB) * TB
    nb = Bp // TB

    f32, bf16 = jnp.float32, jnp.bfloat16
    zeros = lambda r, c: jnp.zeros((r, c), f32)
    gate = lambda w, g: w[:, g * H:(g + 1) * H]

    # Single forward-time input stream, batch-block-major then time-major so
    # each grid step reads one contiguous (T*TB, E) slab (no in-kernel reshape,
    # no duplicated / reversed copy of x).
    x_pad = jnp.zeros((Bp, T, E), f32).at[:B].set(x_emb.astype(f32))
    xt = (x_pad.reshape(nb, TB, T, E).transpose(0, 2, 1, 3)
               .reshape(nb * T * TB, E).astype(bf16))

    # Dense bidirectional input-projection weight, gate-major columns
    # [r_f r_b | z_f z_b | n_f n_b].
    wih_f, wih_b = params["wih_f"], params["wih_b"]
    wih_cat = jnp.concatenate(
        [gate(wih_f, 0), gate(wih_b, 0),
         gate(wih_f, 1), gate(wih_b, 1),
         gate(wih_f, 2), gate(wih_b, 2)], axis=1).astype(bf16)   # (E, 6H)

    # Block-diagonal recurrent weight in the same gate-major column order.
    whh_f, whh_b = params["whh_f"], params["whh_b"]
    whh_cat = jnp.concatenate([
        jnp.concatenate([gate(whh_f, 0), zeros(H, H), gate(whh_f, 1),
                         zeros(H, H), gate(whh_f, 2), zeros(H, H)], axis=1),
        jnp.concatenate([zeros(H, H), gate(whh_b, 0), zeros(H, H),
                         gate(whh_b, 1), zeros(H, H), gate(whh_b, 2)], axis=1),
    ], axis=0).astype(bf16)                                      # (2H, 6H)

    bih_f, bih_b = params["bih_f"], params["bih_b"]
    bhh_f, bhh_b = params["bhh_f"], params["bhh_b"]
    gx_bias = jnp.concatenate([
        bih_f[:, :H] + bhh_f[:, :H], bih_b[:, :H] + bhh_b[:, :H],
        bih_f[:, H:2 * H] + bhh_f[:, H:2 * H],
        bih_b[:, H:2 * H] + bhh_b[:, H:2 * H],
        bih_f[:, 2 * H:], bih_b[:, 2 * H:]], axis=1)             # (1, 6H)
    bhn = jnp.concatenate([bhh_f[:, 2 * H:], bhh_b[:, 2 * H:]], axis=1)

    # Conv weights: forward half -> lanes [0, Fp), backward half -> [Fp, 2Fp).
    wc_cat = (jnp.zeros((2 * H, 2 * Fp), f32)
              .at[:H, :F].set(params["wc_f"])
              .at[H:, Fp:Fp + F].set(params["wc_b"])).astype(bf16)
    bc_pad = jnp.zeros((1, Fp), f32).at[:, :F].set(params["bc"])

    # fc1 split: [w1f; w1b] for the final hidden states, zero-padded w1p for
    # the lane-padded pooled features.  fc2 padded to 128 output lanes.
    w1hb = jnp.concatenate([params["w1f"], params["w1b"]], axis=0).astype(bf16)
    w1p_pad = jnp.zeros((Fp, FC), f32).at[:F].set(params["w1p"]).astype(bf16)
    w2_pad = jnp.zeros((FC, Cp), f32).at[:, :C].set(params["w2"]).astype(bf16)
    b2_pad = jnp.zeros((1, Cp), f32).at[:, :C].set(params["b2"])

    inputs = (xt, wih_cat, gx_bias, whh_cat, bhn, wc_cat, bc_pad,
              w1hb, w1p_pad, params["b1"], w2_pad, b2_pad)
    vmem = pltpu.MemorySpace.VMEM
    kernel = functools.partial(conv_rnn_kernel, T, TB, H, Fp)
    out = pl.pallas_call(
        kernel,
        out_shape=jax.ShapeDtypeStruct((Bp, Cp), jnp.float32),
        grid=(nb,),
        in_specs=([pl.BlockSpec((T * TB, E), lambda b: (b, 0))]
                  + [pl.BlockSpec(memory_space=vmem)] * (len(inputs) - 1)),
        out_specs=pl.BlockSpec((TB, Cp), lambda b: (b, 0)),
        scratch_shapes=[pltpu.VMEM((T * TB, 6 * H), jnp.float32),
                        pltpu.VMEM((T * TB, 2 * H), jnp.bfloat16)],
        compiler_params=pltpu.CompilerParams(
            dimension_semantics=("parallel",),
            vmem_limit_bytes=32 * 1024 * 1024),
    )(*inputs)
    return out[:B, :C]


def reference_forward(x_emb, params):
    """Pure-JAX reference mirroring the PyTorch forward (eval mode), f32 HIGHEST."""
    B, T, E = x_emb.shape
    H = params["whh_f"].shape[0]
    x_dot = lambda a, b: jnp.dot(a, b, precision=jax.lax.Precision.HIGHEST)
    xt = jnp.transpose(x_emb, (1, 0, 2))                         # (T, B, E)

    def gru_step(gx, h, whh, bhh):
        gh = x_dot(h, whh) + bhh
        r = jax.nn.sigmoid(gx[:, :H] + gh[:, :H])
        z = jax.nn.sigmoid(gx[:, H:2 * H] + gh[:, H:2 * H])
        n = jnp.tanh(gx[:, 2 * H:] + r * gh[:, 2 * H:])
        return (1.0 - z) * n + z * h

    gx_f = x_dot(xt.reshape(T * B, E), params["wih_f"]).reshape(T, B, 3 * H) + params["bih_f"]
    gx_b = x_dot(xt.reshape(T * B, E), params["wih_b"]).reshape(T, B, 3 * H) + params["bih_b"]

    h = jnp.zeros((B, H), jnp.float32)
    seq_f = []
    for t in range(T):
        h = gru_step(gx_f[t], h, params["whh_f"], params["bhh_f"])
        seq_f.append(h)
    h_f = h
    h = jnp.zeros((B, H), jnp.float32)
    seq_b = [None] * T
    for t in range(T - 1, -1, -1):
        h = gru_step(gx_b[t], h, params["whh_b"], params["bhh_b"])
        seq_b[t] = h
    h_b = h

    sf = jnp.stack(seq_f, axis=0).reshape(T * B, H)
    sb = jnp.stack(seq_b, axis=0).reshape(T * B, H)
    conv = x_dot(sf, params["wc_f"]) + x_dot(sb, params["wc_b"]) + params["bc"]
    conv = jnp.maximum(conv, 0.0).reshape(T, B, -1)
    pooled = jnp.max(conv, axis=0)

    z1 = (x_dot(h_f, params["w1f"]) + x_dot(h_b, params["w1b"])
          + x_dot(pooled, params["w1p"]) + params["b1"])
    z1 = jnp.maximum(z1, 0.0)
    return x_dot(z1, params["w2"]) + params["b2"]


if __name__ == "__main__":
    # Small config consistent with the module's __init__.
    V, E = 100, 16          # vocab, embedding_dim
    B, T = 2, 8             # batch, seq len
    H = 32                  # hidden_size
    F = 8                   # n_feature_maps
    FC = 64                 # fc_size
    C = 4                   # N_CLASSES

    key = jax.random.PRNGKey(0)
    ks = jax.random.split(key, 20)
    rnd = lambda k, shape, s=0.1: (s * jax.random.normal(k, shape)).astype(jnp.float32)

    params = {
        # GRU forward direction (gate order [r, z, n], right-multiply layout)
        "wih_f": rnd(ks[0], (E, 3 * H)), "whh_f": rnd(ks[1], (H, 3 * H)),
        "bih_f": rnd(ks[2], (1, 3 * H)), "bhh_f": rnd(ks[3], (1, 3 * H)),
        # GRU backward direction
        "wih_b": rnd(ks[4], (E, 3 * H)), "whh_b": rnd(ks[5], (H, 3 * H)),
        "bih_b": rnd(ks[6], (1, 3 * H)), "bhh_b": rnd(ks[7], (1, 3 * H)),
        # Conv2d(1, F, (1, 2H)) split into [forward-half, backward-half] weights
        "wc_f": rnd(ks[8], (H, F)), "wc_b": rnd(ks[9], (H, F)), "bc": rnd(ks[10], (1, F)),
        # fc1 over concat([h_f, h_b, pooled]) split into three blocks
        "w1f": rnd(ks[11], (H, FC)), "w1b": rnd(ks[12], (H, FC)),
        "w1p": rnd(ks[13], (F, FC)), "b1": rnd(ks[14], (1, FC)),
        # fc2
        "w2": rnd(ks[15], (FC, C)), "b2": rnd(ks[16], (1, C)),
        # embedding table (glue; lookup done in plain JAX)
        "emb": rnd(ks[17], (V, E), s=1.0),
    }

    tokens = jax.random.randint(ks[18], (B, T), 0, V)            # (B, T) int ids
    x_emb = params["emb"][tokens].astype(jnp.float32)            # (B, T, E)

    out = conv_rnn_forward(x_emb, params)
    out = jax.block_until_ready(out)

    ref = reference_forward(x_emb, params)
    assert out.shape == (B, C), out.shape
    assert bool(jnp.all(jnp.isfinite(out)))
    # bf16 matmul operands vs. f32 HIGHEST reference -> loose-but-meaningful tol.
    assert bool(jnp.allclose(out, ref, atol=3e-2, rtol=3e-2)), (out, ref)

    print("KERNEL_OK")
</pallas_src>

<mosaic_0001>
module attributes {stable_mosaic.version = 11 : i64} {
  func.func @conv_rnn_kernel(%arg0: i32, %arg1: memref<128x16xbf16, #tpu.memory_space<vmem>>, %arg2: memref<16x192xbf16, #tpu.memory_space<vmem>>, %arg3: memref<1x192xf32, #tpu.memory_space<vmem>>, %arg4: memref<64x192xbf16, #tpu.memory_space<vmem>>, %arg5: memref<1x64xf32, #tpu.memory_space<vmem>>, %arg6: memref<64x256xbf16, #tpu.memory_space<vmem>>, %arg7: memref<1x128xf32, #tpu.memory_space<vmem>>, %arg8: memref<64x64xbf16, #tpu.memory_space<vmem>>, %arg9: memref<128x64xbf16, #tpu.memory_space<vmem>>, %arg10: memref<1x64xf32, #tpu.memory_space<vmem>>, %arg11: memref<64x128xbf16, #tpu.memory_space<vmem>>, %arg12: memref<1x128xf32, #tpu.memory_space<vmem>>, %arg13: memref<16x128xf32, #tpu.memory_space<vmem>>, %arg14: memref<128x192xf32, #tpu.memory_space<vmem>>, %arg15: memref<128x64xbf16, #tpu.memory_space<vmem>>) attributes {dimension_semantics = [#tpu.dimension_semantics<parallel>], iteration_bounds = array<i64: 1>, scalar_prefetch = 0 : i64, scratch_operands = 2 : i64, tpu.core_type = #tpu.core_type<tc>, window_params = [{transform_indices = @transform_0, window_bounds = array<i64: 128, 16>}, {pipeline_mode = #tpu.pipeline_mode<synchronous>, transform_indices = @transform_1, window_bounds = array<i64: 16, 192>}, {pipeline_mode = #tpu.pipeline_mode<synchronous>, transform_indices = @transform_2, window_bounds = array<i64: 1, 192>}, {pipeline_mode = #tpu.pipeline_mode<synchronous>, transform_indices = @transform_3, window_bounds = array<i64: 64, 192>}, {pipeline_mode = #tpu.pipeline_mode<synchronous>, transform_indices = @transform_4, window_bounds = array<i64: 1, 64>}, {pipeline_mode = #tpu.pipeline_mode<synchronous>, transform_indices = @transform_5, window_bounds = array<i64: 64, 256>}, {pipeline_mode = #tpu.pipeline_mode<synchronous>, transform_indices = @transform_6, window_bounds = array<i64: 1, 128>}, {pipeline_mode = #tpu.pipeline_mode<synchronous>, transform_indices = @transform_7, window_bounds = array<i64: 64, 64>}, {pipeline_mode = #tpu.pipeline_mode<synchronous>, transform_indices = @transform_8, window_bounds = array<i64: 128, 64>}, {pipeline_mode = #tpu.pipeline_mode<synchronous>, transform_indices = @transform_9, window_bounds = array<i64: 1, 64>}, {pipeline_mode = #tpu.pipeline_mode<synchronous>, transform_indices = @transform_10, window_bounds = array<i64: 64, 128>}, {pipeline_mode = #tpu.pipeline_mode<synchronous>, transform_indices = @transform_11, window_bounds = array<i64: 1, 128>}, {transform_indices = @transform_12, window_bounds = array<i64: 16, 128>}]} {
    %c0 = arith.constant 0 : index
    %c0_0 = arith.constant 0 : index
    %0 = vector.load %arg1[%c0, %c0_0] : memref<128x16xbf16, #tpu.memory_space<vmem>>, vector<128x16xbf16>
    %c0_1 = arith.constant 0 : index
    %c0_2 = arith.constant 0 : index
    %1 = vector.load %arg2[%c0_1, %c0_2] : memref<16x192xbf16, #tpu.memory_space<vmem>>, vector<16x192xbf16>
    %cst = arith.constant dense<0.000000e+00> : vector<128x192xf32>
    %2 = tpu.matmul %0, %1, %cst {dimension_numbers = #tpu.dot_dimension_numbers<[1], [0], [0], [1], [0, 0, 1, 1], [], []>} : vector<128x16xbf16>, vector<16x192xbf16>, vector<128x192xf32> -> vector<128x192xf32>
    %c0_3 = arith.constant 0 : index
    %c0_4 = arith.constant 0 : index
    %3 = vector.load %arg3[%c0_3, %c0_4] : memref<1x192xf32, #tpu.memory_space<vmem>>, vector<1x192xf32>
    %4 = vector.broadcast %3 : vector<1x192xf32> to vector<128x192xf32>
    %5 = arith.addf %2, %4 : vector<128x192xf32>
    %c0_5 = arith.constant 0 : index
    %c0_6 = arith.constant 0 : index
    %6 = vector.load %arg14[%c0_5, %c0_6] : memref<128x192xf32, #tpu.memory_space<vmem>>, vector<128x192xf32>
    tpu.vector_store %arg14[%c0_5, %c0_6], %5 {strides = array<i32>} : memref<128x192xf32, #tpu.memory_space<vmem>>, vector<128x192xf32>,
    %c0_7 = arith.constant 0 : index
    %c0_8 = arith.constant 0 : index
    %7 = vector.load %arg4[%c0_7, %c0_8] : memref<64x192xbf16, #tpu.memory_space<vmem>>, vector<64x192xbf16>
    %c0_9 = arith.constant 0 : index
    %c0_10 = arith.constant 0 : index
    %8 = vector.load %arg5[%c0_9, %c0_10] : memref<1x64xf32, #tpu.memory_space<vmem>>, vector<1x64xf32>
    %9 = tpu.iota {dimensions = array<i32: 1>} : vector<16x192xi32>
    %c32_i32 = arith.constant 32 : i32
    %10 = vector.broadcast %c32_i32 : i32 to vector<16x192xi32>
    %11 = arith.cmpi slt, %9, %10 : vector<16x192xi32>
    %c64_i32 = arith.constant 64 : i32
    %12 = vector.broadcast %c64_i32 : i32 to vector<16x192xi32>
    %13 = arith.cmpi sge, %9, %12 : vector<16x192xi32>
    %c96_i32 = arith.constant 96 : i32
    %14 = vector.broadcast %c96_i32 : i32 to vector<16x192xi32>
    %15 = arith.cmpi slt, %9, %14 : vector<16x192xi32>
    %16 = arith.andi %13, %15 : vector<16x192xi1>
    %17 = arith.ori %11, %16 : vector<16x192xi1>
    %c128_i32 = arith.constant 128 : i32
    %18 = vector.broadcast %c128_i32 : i32 to vector<16x192xi32>
    %19 = arith.cmpi sge, %9, %18 : vector<16x192xi32>
    %c160_i32 = arith.constant 160 : i32
    %20 = vector.broadcast %c160_i32 : i32 to vector<16x192xi32>
    %21 = arith.cmpi slt, %9, %20 : vector<16x192xi32>
    %22 = arith.andi %19, %21 : vector<16x192xi1>
    %23 = arith.ori %17, %22 : vector<16x192xi1>
    %cst_11 = arith.constant 0.000000e+00 : f32
    %24 = vector.broadcast %cst_11 : f32 to vector<16x64xf32>
    %c0_12 = arith.constant 0 : index
    %c0_13 = arith.constant 0 : index
    %25 = vector.load %arg14[%c0_12, %c0_13] : memref<128x192xf32, #tpu.memory_space<vmem>>, vector<16x192xf32>
    %c112 = arith.constant 112 : index
    %c0_14 = arith.constant 0 : index
    %26 = vector.load %arg14[%c112, %c0_14] : memref<128x192xf32, #tpu.memory_space<vmem>>, vector<16x192xf32>
    %27 = arith.select %23, %25, %26 : vector<16x192xi1>, vector<16x192xf32>
    %28 = arith.truncf %24 : vector<16x64xf32> to vector<16x64xbf16>
    %cst_15 = arith.constant dense<0.000000e+00> : vector<16x192xf32>
    %29 = tpu.matmul %28, %7, %cst_15 {dimension_numbers = #tpu.dot_dimension_numbers<[1], [0], [0], [1], [0, 0, 1, 1], [], []>} : vector<16x64xbf16>, vector<64x192xbf16>, vector<16x192xf32> -> vector<16x192xf32>
    %30 = vector.extract_strided_slice %27 {offsets = [0, 0], sizes = [16, 128], strides = [1, 1]} : vector<16x192xf32> to vector<16x128xf32>
    %31 = vector.extract_strided_slice %29 {offsets = [0, 0], sizes = [16, 128], strides = [1, 1]} : vector<16x192xf32> to vector<16x128xf32>
    %32 = arith.addf %30, %31 : vector<16x128xf32>
    %33 = arith.negf %32 : vector<16x128xf32>
    %34 = math.exp %33 : vector<16x128xf32>
    %cst_16 = arith.constant 1.000000e+00 : f32
    %35 = vector.broadcast %cst_16 : f32 to vector<16x128xf32>
    %36 = arith.addf %35, %34 : vector<16x128xf32>
    %37 = arith.divf %35, %36 : vector<16x128xf32>
    %38 = vector.extract_strided_slice %37 {offsets = [0, 0], sizes = [16, 64], strides = [1, 1]} : vector<16x128xf32> to vector<16x64xf32>
    %39 = vector.extract_strided_slice %37 {offsets = [0, 64], sizes = [16, 64], strides = [1, 1]} : vector<16x128xf32> to vector<16x64xf32>
    %40 = vector.extract_strided_slice %27 {offsets = [0, 128], sizes = [16, 64], strides = [1, 1]} : vector<16x192xf32> to vector<16x64xf32>
    %41 = vector.extract_strided_slice %29 {offsets = [0, 128], sizes = [16, 64], strides = [1, 1]} : vector<16x192xf32> to vector<16x64xf32>
    %42 = vector.broadcast %8 : vector<1x64xf32> to vector<16x64xf32>
    %43 = arith.addf %41, %42 : vector<16x64xf32>
    %44 = arith.mulf %38, %43 : vector<16x64xf32>
    %45 = arith.addf %40, %44 : vector<16x64xf32>
    %46 = math.tanh %45 : vector<16x64xf32>
    %47 = arith.subf %24, %46 : vector<16x64xf32>
    %48 = arith.mulf %39, %47 : vector<16x64xf32>
    %49 = arith.addf %46, %48 : vector<16x64xf32>
    %50 = arith.truncf %49 : vector<16x64xf32> to vector<16x64xbf16>
    %c0_17 = arith.constant 0 : index
    %c0_18 = arith.constant 0 : index
    %51 = vector.load %arg15[%c0_17, %c0_18] : memref<128x64xbf16, #tpu.memory_space<vmem>>, vector<16x64xbf16>
    tpu.vector_store %arg15[%c0_17, %c0_18], %50 {strides = array<i32>} : memref<128x64xbf16, #tpu.memory_space<vmem>>, vector<16x64xbf16>,
    %c16 = arith.constant 16 : index
    %c0_19 = arith.constant 0 : index
    %52 = vector.load %arg14[%c16, %c0_19] : memref<128x192xf32, #tpu.memory_space<vmem>>, vector<16x192xf32>
    %c96 = arith.constant 96 : index
    %c0_20 = arith.constant 0 : index
    %53 = vector.load %arg14[%c96, %c0_20] : memref<128x192xf32, #tpu.memory_space<vmem>>, vector<16x192xf32>
    %54 = arith.select %23, %52, %53 : vector<16x192xi1>, vector<16x192xf32>
    %55 = arith.truncf %49 : vector<16x64xf32> to vector<16x64xbf16>
    %cst_21 = arith.constant dense<0.000000e+00> : vector<16x192xf32>
    %56 = tpu.matmul %55, %7, %cst_21 {dimension_numbers = #tpu.dot_dimension_numbers<[1], [0], [0], [1], [0, 0, 1, 1], [], []>} : vector<16x64xbf16>, vector<64x192xbf16>, vector<16x192xf32> -> vector<16x192xf32>
    %57 = vector.extract_strided_slice %54 {offsets = [0, 0], sizes = [16, 128], strides = [1, 1]} : vector<16x192xf32> to vector<16x128xf32>
    %58 = vector.extract_strided_slice %56 {offsets = [0, 0], sizes = [16, 128], strides = [1, 1]} : vector<16x192xf32> to vector<16x128xf32>
    %59 = arith.addf %57, %58 : vector<16x128xf32>
    %60 = arith.negf %59 : vector<16x128xf32>
    %61 = math.exp %60 : vector<16x128xf32>
    %cst_22 = arith.constant 1.000000e+00 : f32
    %62 = vector.broadcast %cst_22 : f32 to vector<16x128xf32>
    %63 = arith.addf %62, %61 : vector<16x128xf32>
    %64 = arith.divf %62, %63 : vector<16x128xf32>
    %65 = vector.extract_strided_slice %64 {offsets = [0, 0], sizes = [16, 64], strides = [1, 1]} : vector<16x128xf32> to vector<16x64xf32>
    %66 = vector.extract_strided_slice %64 {offsets = [0, 64], sizes = [16, 64], strides = [1, 1]} : vector<16x128xf32> to vector<16x64xf32>
    %67 = vector.extract_strided_slice %54 {offsets = [0, 128], sizes = [16, 64], strides = [1, 1]} : vector<16x192xf32> to vector<16x64xf32>
    %68 = vector.extract_strided_slice %56 {offsets = [0, 128], sizes = [16, 64], strides = [1, 1]} : vector<16x192xf32> to vector<16x64xf32>
    %69 = vector.broadcast %8 : vector<1x64xf32> to vector<16x64xf32>
    %70 = arith.addf %68, %69 : vector<16x64xf32>
    %71 = arith.mulf %65, %70 : vector<16x64xf32>
    %72 = arith.addf %67, %71 : vector<16x64xf32>
    %73 = math.tanh %72 : vector<16x64xf32>
    %74 = arith.subf %49, %73 : vector<16x64xf32>
    %75 = arith.mulf %66, %74 : vector<16x64xf32>
    %76 = arith.addf %73, %75 : vector<16x64xf32>
    %77 = arith.truncf %76 : vector<16x64xf32> to vector<16x64xbf16>
    %c16_23 = arith.constant 16 : index
    %c0_24 = arith.constant 0 : index
    %78 = vector.load %arg15[%c16_23, %c0_24] : memref<128x64xbf16, #tpu.memory_space<vmem>>, vector<16x64xbf16>
    tpu.vector_store %arg15[%c16_23, %c0_24], %77 {strides = array<i32>} : memref<128x64xbf16, #tpu.memory_space<vmem>>, vector<16x64xbf16>,
    %c32 = arith.constant 32 : index
    %c0_25 = arith.constant 0 : index
    %79 = vector.load %arg14[%c32, %c0_25] : memref<128x192xf32, #tpu.memory_space<vmem>>, vector<16x192xf32>
    %c80 = arith.constant 80 : index
    %c0_26 = arith.constant 0 : index
    %80 = vector.load %arg14[%c80, %c0_26] : memref<128x192xf32, #tpu.memory_space<vmem>>, vector<16x192xf32>
    %81 = arith.select %23, %79, %80 : vector<16x192xi1>, vector<16x192xf32>
    %82 = arith.truncf %76 : vector<16x64xf32> to vector<16x64xbf16>
    %cst_27 = arith.constant dense<0.000000e+00> : vector<16x192xf32>
    %83 = tpu.matmul %82, %7, %cst_27 {dimension_numbers = #tpu.dot_dimension_numbers<[1], [0], [0], [1], [0, 0, 1, 1], [], []>} : vector<16x64xbf16>, vector<64x192xbf16>, vector<16x192xf32> -> vector<16x192xf32>
    %84 = vector.extract_strided_slice %81 {offsets = [0, 0], sizes = [16, 128], strides = [1, 1]} : vector<16x192xf32> to vector<16x128xf32>
    %85 = vector.extract_strided_slice %83 {offsets = [0, 0], sizes = [16, 128], strides = [1, 1]} : vector<16x192xf32> to vector<16x128xf32>
    %86 = arith.addf %84, %85 : vector<16x128xf32>
    %87 = arith.negf %86 : vector<16x128xf32>
    %88 = math.exp %87 : vector<16x128xf32>
    %cst_28 = arith.constant 1.000000e+00 : f32
    %89 = vector.broadcast %cst_28 : f32 to vector<16x128xf32>
    %90 = arith.addf %89, %88 : vector<16x128xf32>
    %91 = arith.divf %89, %90 : vector<16x128xf32>
    %92 = vector.extract_strided_slice %91 {offsets = [0, 0], sizes = [16, 64], strides = [1, 1]} : vector<16x128xf32> to vector<16x64xf32>
    %93 = vector.extract_strided_slice %91 {offsets = [0, 64], sizes = [16, 64], strides = [1, 1]} : vector<16x128xf32> to vector<16x64xf32>
    %94 = vector.extract_strided_slice %81 {offsets = [0, 128], sizes = [16, 64], strides = [1, 1]} : vector<16x192xf32> to vector<16x64xf32>
    %95 = vector.extract_strided_slice %83 {offsets = [0, 128], sizes = [16, 64], strides = [1, 1]} : vector<16x192xf32> to vector<16x64xf32>
    %96 = vector.broadcast %8 : vector<1x64xf32> to vector<16x64xf32>
    %97 = arith.addf %95, %96 : vector<16x64xf32>
    %98 = arith.mulf %92, %97 : vector<16x64xf32>
    %99 = arith.addf %94, %98 : vector<16x64xf32>
    %100 = math.tanh %99 : vector<16x64xf32>
    %101 = arith.subf %76, %100 : vector<16x64xf32>
    %102 = arith.mulf %93, %101 : vector<16x64xf32>
    %103 = arith.addf %100, %102 : vector<16x64xf32>
    %104 = arith.truncf %103 : vector<16x64xf32> to vector<16x64xbf16>
    %c32_29 = arith.constant 32 : index
    %c0_30 = arith.constant 0 : index
    %105 = vector.load %arg15[%c32_29, %c0_30] : memref<128x64xbf16, #tpu.memory_space<vmem>>, vector<16x64xbf16>
    tpu.vector_store %arg15[%c32_29, %c0_30], %104 {strides = array<i32>} : memref<128x64xbf16, #tpu.memory_space<vmem>>, vector<16x64xbf16>,
    %c48 = arith.constant 48 : index
    %c0_31 = arith.constant 0 : index
    %106 = vector.load %arg14[%c48, %c0_31] : memref<128x192xf32, #tpu.memory_space<vmem>>, vector<16x192xf32>
    %c64 = arith.constant 64 : index
    %c0_32 = arith.constant 0 : index
    %107 = vector.load %arg14[%c64, %c0_32] : memref<128x192xf32, #tpu.memory_space<vmem>>, vector<16x192xf32>
    %108 = arith.select %23, %106, %107 : vector<16x192xi1>, vector<16x192xf32>
    %109 = arith.truncf %103 : vector<16x64xf32> to vector<16x64xbf16>
    %cst_33 = arith.constant dense<0.000000e+00> : vector<16x192xf32>
    %110 = tpu.matmul %109, %7, %cst_33 {dimension_numbers = #tpu.dot_dimension_numbers<[1], [0], [0], [1], [0, 0, 1, 1], [], []>} : vector<16x64xbf16>, vector<64x192xbf16>, vector<16x192xf32> -> vector<16x192xf32>
    %111 = vector.extract_strided_slice %108 {offsets = [0, 0], sizes = [16, 128], strides = [1, 1]} : vector<16x192xf32> to vector<16x128xf32>
    %112 = vector.extract_strided_slice %110 {offsets = [0, 0], sizes = [16, 128], strides = [1, 1]} : vector<16x192xf32> to vector<16x128xf32>
    %113 = arith.addf %111, %112 : vector<16x128xf32>
    %114 = arith.negf %113 : vector<16x128xf32>
    %115 = math.exp %114 : vector<16x128xf32>
    %cst_34 = arith.constant 1.000000e+00 : f32
    %116 = vector.broadcast %cst_34 : f32 to vector<16x128xf32>
    %117 = arith.addf %116, %115 : vector<16x128xf32>
    %118 = arith.divf %116, %117 : vector<16x128xf32>
    %119 = vector.extract_strided_slice %118 {offsets = [0, 0], sizes = [16, 64], strides = [1, 1]} : vector<16x128xf32> to vector<16x64xf32>
    %120 = vector.extract_strided_slice %118 {offsets = [0, 64], sizes = [16, 64], strides = [1, 1]} : vector<16x128xf32> to vector<16x64xf32>
    %121 = vector.extract_strided_slice %108 {offsets = [0, 128], sizes = [16, 64], strides = [1, 1]} : vector<16x192xf32> to vector<16x64xf32>
    %122 = vector.extract_strided_slice %110 {offsets = [0, 128], sizes = [16, 64], strides = [1, 1]} : vector<16x192xf32> to vector<16x64xf32>
    %123 = vector.broadcast %8 : vector<1x64xf32> to vector<16x64xf32>
    %124 = arith.addf %122, %123 : vector<16x64xf32>
    %125 = arith.mulf %119, %124 : vector<16x64xf32>
    %126 = arith.addf %121, %125 : vector<16x64xf32>
    %127 = math.tanh %126 : vector<16x64xf32>
    %128 = arith.subf %103, %127 : vector<16x64xf32>
    %129 = arith.mulf %120, %128 : vector<16x64xf32>
    %130 = arith.addf %127, %129 : vector<16x64xf32>
    %131 = arith.truncf %130 : vector<16x64xf32> to vector<16x64xbf16>
    %c48_35 = arith.constant 48 : index
    %c0_36 = arith.constant 0 : index
    %132 = vector.load %arg15[%c48_35, %c0_36] : memref<128x64xbf16, #tpu.memory_space<vmem>>, vector<16x64xbf16>
    tpu.vector_store %arg15[%c48_35, %c0_36], %131 {strides = array<i32>} : memref<128x64xbf16, #tpu.memory_space<vmem>>, vector<16x64xbf16>,
    %c64_37 = arith.constant 64 : index
    %c0_38 = arith.constant 0 : index
    %133 = vector.load %arg14[%c64_37, %c0_38] : memref<128x192xf32, #tpu.memory_space<vmem>>, vector<16x192xf32>
    %c48_39 = arith.constant 48 : index
    %c0_40 = arith.constant 0 : index
    %134 = vector.load %arg14[%c48_39, %c0_40] : memref<128x192xf32, #tpu.memory_space<vmem>>, vector<16x192xf32>
    %135 = arith.select %23, %133, %134 : vector<16x192xi1>, vector<16x192xf32>
    %136 = arith.truncf %130 : vector<16x64xf32> to vector<16x64xbf16>
    %cst_41 = arith.constant dense<0.000000e+00> : vector<16x192xf32>
    %137 = tpu.matmul %136, %7, %cst_41 {dimension_numbers = #tpu.dot_dimension_numbers<[1], [0], [0], [1], [0, 0, 1, 1], [], []>} : vector<16x64xbf16>, vector<64x192xbf16>, vector<16x192xf32> -> vector<16x192xf32>
    %138 = vector.extract_strided_slice %135 {offsets = [0, 0], sizes = [16, 128], strides = [1, 1]} : vector<16x192xf32> to vector<16x128xf32>
    %139 = vector.extract_strided_slice %137 {offsets = [0, 0], sizes = [16, 128], strides = [1, 1]} : vector<16x192xf32> to vector<16x128xf32>
    %140 = arith.addf %138, %139 : vector<16x128xf32>
    %141 = arith.negf %140 : vector<16x128xf32>
    %142 = math.exp %141 : vector<16x128xf32>
    %cst_42 = arith.constant 1.000000e+00 : f32
    %143 = vector.broadcast %cst_42 : f32 to vector<16x128xf32>
    %144 = arith.addf %143, %142 : vector<16x128xf32>
    %145 = arith.divf %143, %144 : vector<16x128xf32>
    %146 = vector.extract_strided_slice %145 {offsets = [0, 0], sizes = [16, 64], strides = [1, 1]} : vector<16x128xf32> to vector<16x64xf32>
    %147 = vector.extract_strided_slice %145 {offsets = [0, 64], sizes = [16, 64], strides = [1, 1]} : vector<16x128xf32> to vector<16x64xf32>
    %148 = vector.extract_strided_slice %135 {offsets = [0, 128], sizes = [16, 64], strides = [1, 1]} : vector<16x192xf32> to vector<16x64xf32>
    %149 = vector.extract_strided_slice %137 {offsets = [0, 128], sizes = [16, 64], strides = [1, 1]} : vector<16x192xf32> to vector<16x64xf32>
    %150 = vector.broadcast %8 : vector<1x64xf32> to vector<16x64xf32>
    %151 = arith.addf %149, %150 : vector<16x64xf32>
    %152 = arith.mulf %146, %151 : vector<16x64xf32>
    %153 = arith.addf %148, %152 : vector<16x64xf32>
    %154 = math.tanh %153 : vector<16x64xf32>
    %155 = arith.subf %130, %154 : vector<16x64xf32>
    %156 = arith.mulf %147, %155 : vector<16x64xf32>
    %157 = arith.addf %154, %156 : vector<16x64xf32>
    %158 = arith.truncf %157 : vector<16x64xf32> to vector<16x64xbf16>
    %c64_43 = arith.constant 64 : index
    %c0_44 = arith.constant 0 : index
    %159 = vector.load %arg15[%c64_43, %c0_44] : memref<128x64xbf16, #tpu.memory_space<vmem>>, vector<16x64xbf16>
    tpu.vector_store %arg15[%c64_43, %c0_44], %158 {strides = array<i32>} : memref<128x64xbf16, #tpu.memory_space<vmem>>, vector<16x64xbf16>,
    %c80_45 = arith.constant 80 : index
    %c0_46 = arith.constant 0 : index
    %160 = vector.load %arg14[%c80_45, %c0_46] : memref<128x192xf32, #tpu.memory_space<vmem>>, vector<16x192xf32>
    %c32_47 = arith.constant 32 : index
    %c0_48 = arith.constant 0 : index
    %161 = vector.load %arg14[%c32_47, %c0_48] : memref<128x192xf32, #tpu.memory_space<vmem>>, vector<16x192xf32>
    %162 = arith.select %23, %160, %161 : vector<16x192xi1>, vector<16x192xf32>
    %163 = arith.truncf %157 : vector<16x64xf32> to vector<16x64xbf16>
    %cst_49 = arith.constant dense<0.000000e+00> : vector<16x192xf32>
    %164 = tpu.matmul %163, %7, %cst_49 {dimension_numbers = #tpu.dot_dimension_numbers<[1], [0], [0], [1], [0, 0, 1, 1], [], []>} : vector<16x64xbf16>, vector<64x192xbf16>, vector<16x192xf32> -> vector<16x192xf32>
    %165 = vector.extract_strided_slice %162 {offsets = [0, 0], sizes = [16, 128], strides = [1, 1]} : vector<16x192xf32> to vector<16x128xf32>
    %166 = vector.extract_strided_slice %164 {offsets = [0, 0], sizes = [16, 128], strides = [1, 1]} : vector<16x192xf32> to vector<16x128xf32>
    %167 = arith.addf %165, %166 : vector<16x128xf32>
    %168 = arith.negf %167 : vector<16x128xf32>
    %169 = math.exp %168 : vector<16x128xf32>
    %cst_50 = arith.constant 1.000000e+00 : f32
    %170 = vector.broadcast %cst_50 : f32 to vector<16x128xf32>
    %171 = arith.addf %170, %169 : vector<16x128xf32>
    %172 = arith.divf %170, %171 : vector<16x128xf32>
    %173 = vector.extract_strided_slice %172 {offsets = [0, 0], sizes = [16, 64], strides = [1, 1]} : vector<16x128xf32> to vector<16x64xf32>
    %174 = vector.extract_strided_slice %172 {offsets = [0, 64], sizes = [16, 64], strides = [1, 1]} : vector<16x128xf32> to vector<16x64xf32>
    %175 = vector.extract_strided_slice %162 {offsets = [0, 128], sizes = [16, 64], strides = [1, 1]} : vector<16x192xf32> to vector<16x64xf32>
    %176 = vector.extract_strided_slice %164 {offsets = [0, 128], sizes = [16, 64], strides = [1, 1]} : vector<16x192xf32> to vector<16x64xf32>
    %177 = vector.broadcast %8 : vector<1x64xf32> to vector<16x64xf32>
    %178 = arith.addf %176, %177 : vector<16x64xf32>
    %179 = arith.mulf %173, %178 : vector<16x64xf32>
    %180 = arith.addf %175, %179 : vector<16x64xf32>
    %181 = math.tanh %180 : vector<16x64xf32>
    %182 = arith.subf %157, %181 : vector<16x64xf32>
    %183 = arith.mulf %174, %182 : vector<16x64xf32>
    %184 = arith.addf %181, %183 : vector<16x64xf32>
    %185 = arith.truncf %184 : vector<16x64xf32> to vector<16x64xbf16>
    %c80_51 = arith.constant 80 : index
    %c0_52 = arith.constant 0 : index
    %186 = vector.load %arg15[%c80_51, %c0_52] : memref<128x64xbf16, #tpu.memory_space<vmem>>, vector<16x64xbf16>
    tpu.vector_store %arg15[%c80_51, %c0_52], %185 {strides = array<i32>} : memref<128x64xbf16, #tpu.memory_space<vmem>>, vector<16x64xbf16>,
    %c96_53 = arith.constant 96 : index
    %c0_54 = arith.constant 0 : index
    %187 = vector.load %arg14[%c96_53, %c0_54] : memref<128x192xf32, #tpu.memory_space<vmem>>, vector<16x192xf32>
    %c16_55 = arith.constant 16 : index
    %c0_56 = arith.constant 0 : index
    %188 = vector.load %arg14[%c16_55, %c0_56] : memref<128x192xf32, #tpu.memory_space<vmem>>, vector<16x192xf32>
    %189 = arith.select %23, %187, %188 : vector<16x192xi1>, vector<16x192xf32>
    %190 = arith.truncf %184 : vector<16x64xf32> to vector<16x64xbf16>
    %cst_57 = arith.constant dense<0.000000e+00> : vector<16x192xf32>
    %191 = tpu.matmul %190, %7, %cst_57 {dimension_numbers = #tpu.dot_dimension_numbers<[1], [0], [0], [1], [0, 0, 1, 1], [], []>} : vector<16x64xbf16>, vector<64x192xbf16>, vector<16x192xf32> -> vector<16x192xf32>
    %192 = vector.extract_strided_slice %189 {offsets = [0, 0], sizes = [16, 128], strides = [1, 1]} : vector<16x192xf32> to vector<16x128xf32>
    %193 = vector.extract_strided_slice %191 {offsets = [0, 0], sizes = [16, 128], strides = [1, 1]} : vector<16x192xf32> to vector<16x128xf32>
    %194 = arith.addf %192, %193 : vector<16x128xf32>
    %195 = arith.negf %194 : vector<16x128xf32>
    %196 = math.exp %195 : vector<16x128xf32>
    %cst_58 = arith.constant 1.000000e+00 : f32
    %197 = vector.broadcast %cst_58 : f32 to vector<16x128xf32>
    %198 = arith.addf %197, %196 : vector<16x128xf32>
    %199 = arith.divf %197, %198 : vector<16x128xf32>
    %200 = vector.extract_strided_slice %199 {offsets = [0, 0], sizes = [16, 64], strides = [1, 1]} : vector<16x128xf32> to vector<16x64xf32>
    %201 = vector.extract_strided_slice %199 {offsets = [0, 64], sizes = [16, 64], strides = [1, 1]} : vector<16x128xf32> to vector<16x64xf32>
    %202 = vector.extract_strided_slice %189 {offsets = [0, 128], sizes = [16, 64], strides = [1, 1]} : vector<16x192xf32> to vector<16x64xf32>
    %203 = vector.extract_strided_slice %191 {offsets = [0, 128], sizes = [16, 64], strides = [1, 1]} : vector<16x192xf32> to vector<16x64xf32>
    %204 = vector.broadcast %8 : vector<1x64xf32> to vector<16x64xf32>
    %205 = arith.addf %203, %204 : vector<16x64xf32>
    %206 = arith.mulf %200, %205 : vector<16x64xf32>
    %207 = arith.addf %202, %206 : vector<16x64xf32>
    %208 = math.tanh %207 : vector<16x64xf32>
    %209 = arith.subf %184, %208 : vector<16x64xf32>
    %210 = arith.mulf %201, %209 : vector<16x64xf32>
    %211 = arith.addf %208, %210 : vector<16x64xf32>
    %212 = arith.truncf %211 : vector<16x64xf32> to vector<16x64xbf16>
    %c96_59 = arith.constant 96 : index
    %c0_60 = arith.constant 0 : index
    %213 = vector.load %arg15[%c96_59, %c0_60] : memref<128x64xbf16, #tpu.memory_space<vmem>>, vector<16x64xbf16>
    tpu.vector_store %arg15[%c96_59, %c0_60], %212 {strides = array<i32>} : memref<128x64xbf16, #tpu.memory_space<vmem>>, vector<16x64xbf16>,
    %c112_61 = arith.constant 112 : index
    %c0_62 = arith.constant 0 : index
    %214 = vector.load %arg14[%c112_61, %c0_62] : memref<128x192xf32, #tpu.memory_space<vmem>>, vector<16x192xf32>
    %c0_63 = arith.constant 0 : index
    %c0_64 = arith.constant 0 : index
    %215 = vector.load %arg14[%c0_63, %c0_64] : memref<128x192xf32, #tpu.memory_space<vmem>>, vector<16x192xf32>
    %216 = arith.select %23, %214, %215 : vector<16x192xi1>, vector<16x192xf32>
    %217 = arith.truncf %211 : vector<16x64xf32> to vector<16x64xbf16>
    %cst_65 = arith.constant dense<0.000000e+00> : vector<16x192xf32>
    %218 = tpu.matmul %217, %7, %cst_65 {dimension_numbers = #tpu.dot_dimension_numbers<[1], [0], [0], [1], [0, 0, 1, 1], [], []>} : vector<16x64xbf16>, vector<64x192xbf16>, vector<16x192xf32> -> vector<16x192xf32>
    %219 = vector.extract_strided_slice %216 {offsets = [0, 0], sizes = [16, 128], strides = [1, 1]} : vector<16x192xf32> to vector<16x128xf32>
    %220 = vector.extract_strided_slice %218 {offsets = [0, 0], sizes = [16, 128], strides = [1, 1]} : vector<16x192xf32> to vector<16x128xf32>
    %221 = arith.addf %219, %220 : vector<16x128xf32>
    %222 = arith.negf %221 : vector<16x128xf32>
    %223 = math.exp %222 : vector<16x128xf32>
    %cst_66 = arith.constant 1.000000e+00 : f32
    %224 = vector.broadcast %cst_66 : f32 to vector<16x128xf32>
    %225 = arith.addf %224, %223 : vector<16x128xf32>
    %226 = arith.divf %224, %225 : vector<16x128xf32>
    %227 = vector.extract_strided_slice %226 {offsets = [0, 0], sizes = [16, 64], strides = [1, 1]} : vector<16x128xf32> to vector<16x64xf32>
    %228 = vector.extract_strided_slice %226 {offsets = [0, 64], sizes = [16, 64], strides = [1, 1]} : vector<16x128xf32> to vector<16x64xf32>
    %229 = vector.extract_strided_slice %216 {offsets = [0, 128], sizes = [16, 64], strides = [1, 1]} : vector<16x192xf32> to vector<16x64xf32>
    %230 = vector.extract_strided_slice %218 {offsets = [0, 128], sizes = [16, 64], strides = [1, 1]} : vector<16x192xf32> to vector<16x64xf32>
    %231 = vector.broadcast %8 : vector<1x64xf32> to vector<16x64xf32>
    %232 = arith.addf %230, %231 : vector<16x64xf32>
    %233 = arith.mulf %227, %232 : vector<16x64xf32>
    %234 = arith.addf %229, %233 : vector<16x64xf32>
    %235 = math.tanh %234 : vector<16x64xf32>
    %236 = arith.subf %211, %235 : vector<16x64xf32>
    %237 = arith.mulf %228, %236 : vector<16x64xf32>
    %238 = arith.addf %235, %237 : vector<16x64xf32>
    %239 = arith.truncf %238 : vector<16x64xf32> to vector<16x64xbf16>
    %c112_67 = arith.constant 112 : index
    %c0_68 = arith.constant 0 : index
    %240 = vector.load %arg15[%c112_67, %c0_68] : memref<128x64xbf16, #tpu.memory_space<vmem>>, vector<16x64xbf16>
    tpu.vector_store %arg15[%c112_67, %c0_68], %239 {strides = array<i32>} : memref<128x64xbf16, #tpu.memory_space<vmem>>, vector<16x64xbf16>,
    %c0_69 = arith.constant 0 : index
    %c0_70 = arith.constant 0 : index
    %241 = vector.load %arg15[%c0_69, %c0_70] : memref<128x64xbf16, #tpu.memory_space<vmem>>, vector<128x64xbf16>
    %c0_71 = arith.constant 0 : index
    %c0_72 = arith.constant 0 : index
    %242 = vector.load %arg6[%c0_71, %c0_72] : memref<64x256xbf16, #tpu.memory_space<vmem>>, vector<64x256xbf16>
    %cst_73 = arith.constant dense<0.000000e+00> : vector<128x256xf32>
    %243 = tpu.matmul %241, %242, %cst_73 {dimension_numbers = #tpu.dot_dimension_numbers<[1], [0], [0], [1], [0, 0, 1, 1], [], []>} : vector<128x64xbf16>, vector<64x256xbf16>, vector<128x256xf32> -> vector<128x256xf32>
    %c0_74 = arith.constant 0 : index
    %c0_75 = arith.constant 0 : index
    %244 = vector.load %arg7[%c0_74, %c0_75] : memref<1x128xf32, #tpu.memory_space<vmem>>, vector<1x128xf32>
    %245 = vector.extract_strided_slice %243 {offsets = [0, 0], sizes = [16, 128], strides = [1, 1]} : vector<128x256xf32> to vector<16x128xf32>
    %246 = vector.extract_strided_slice %243 {offsets = [112, 128], sizes = [16, 128], strides = [1, 1]} : vector<128x256xf32> to vector<16x128xf32>
    %247 = arith.addf %245, %246 : vector<16x128xf32>
    %248 = vector.broadcast %244 : vector<1x128xf32> to vector<16x128xf32>
    %249 = arith.addf %247, %248 : vector<16x128xf32>
    %cst_76 = arith.constant 0.000000e+00 : f32
    %250 = vector.broadcast %cst_76 : f32 to vector<16x128xf32>
    %251 = arith.maximumf %249, %250 : vector<16x128xf32>
    %252 = vector.extract_strided_slice %243 {offsets = [16, 0], sizes = [16, 128], strides = [1, 1]} : vector<128x256xf32> to vector<16x128xf32>
    %253 = vector.extract_strided_slice %243 {offsets = [96, 128], sizes = [16, 128], strides = [1, 1]} : vector<128x256xf32> to vector<16x128xf32>
    %254 = arith.addf %252, %253 : vector<16x128xf32>
    %255 = vector.broadcast %244 : vector<1x128xf32> to vector<16x128xf32>
    %256 = arith.addf %254, %255 : vector<16x128xf32>
    %cst_77 = arith.constant 0.000000e+00 : f32
    %257 = vector.broadcast %cst_77 : f32 to vector<16x128xf32>
    %258 = arith.maximumf %256, %257 : vector<16x128xf32>
    %259 = arith.maximumf %251, %258 : vector<16x128xf32>
    %260 = vector.extract_strided_slice %243 {offsets = [32, 0], sizes = [16, 128], strides = [1, 1]} : vector<128x256xf32> to vector<16x128xf32>
    %261 = vector.extract_strided_slice %243 {offsets = [80, 128], sizes = [16, 128], strides = [1, 1]} : vector<128x256xf32> to vector<16x128xf32>
    %262 = arith.addf %260, %261 : vector<16x128xf32>
    %263 = vector.broadcast %244 : vector<1x128xf32> to vector<16x128xf32>
    %264 = arith.addf %262, %263 : vector<16x128xf32>
    %cst_78 = arith.constant 0.000000e+00 : f32
    %265 = vector.broadcast %cst_78 : f32 to vector<16x128xf32>
    %266 = arith.maximumf %264, %265 : vector<16x128xf32>
    %267 = arith.maximumf %259, %266 : vector<16x128xf32>
    %268 = vector.extract_strided_slice %243 {offsets = [48, 0], sizes = [16, 128], strides = [1, 1]} : vector<128x256xf32> to vector<16x128xf32>
    %269 = vector.extract_strided_slice %243 {offsets = [64, 128], sizes = [16, 128], strides = [1, 1]} : vector<128x256xf32> to vector<16x128xf32>
    %270 = arith.addf %268, %269 : vector<16x128xf32>
    %271 = vector.broadcast %244 : vector<1x128xf32> to vector<16x128xf32>
    %272 = arith.addf %270, %271 : vector<16x128xf32>
    %cst_79 = arith.constant 0.000000e+00 : f32
    %273 = vector.broadcast %cst_79 : f32 to vector<16x128xf32>
    %274 = arith.maximumf %272, %273 : vector<16x128xf32>
    %275 = arith.maximumf %267, %274 : vector<16x128xf32>
    %276 = vector.extract_strided_slice %243 {offsets = [64, 0], sizes = [16, 128], strides = [1, 1]} : vector<128x256xf32> to vector<16x128xf32>
    %277 = vector.extract_strided_slice %243 {offsets = [48, 128], sizes = [16, 128], strides = [1, 1]} : vector<128x256xf32> to vector<16x128xf32>
    %278 = arith.addf %276, %277 : vector<16x128xf32>
    %279 = vector.broadcast %244 : vector<1x128xf32> to vector<16x128xf32>
    %280 = arith.addf %278, %279 : vector<16x128xf32>
    %cst_80 = arith.constant 0.000000e+00 : f32
    %281 = vector.broadcast %cst_80 : f32 to vector<16x128xf32>
    %282 = arith.maximumf %280, %281 : vector<16x128xf32>
    %283 = arith.maximumf %275, %282 : vector<16x128xf32>
    %284 = vector.extract_strided_slice %243 {offsets = [80, 0], sizes = [16, 128], strides = [1, 1]} : vector<128x256xf32> to vector<16x128xf32>
    %285 = vector.extract_strided_slice %243 {offsets = [32, 128], sizes = [16, 128], strides = [1, 1]} : vector<128x256xf32> to vector<16x128xf32>
    %286 = arith.addf %284, %285 : vector<16x128xf32>
    %287 = vector.broadcast %244 : vector<1x128xf32> to vector<16x128xf32>
    %288 = arith.addf %286, %287 : vector<16x128xf32>
    %cst_81 = arith.constant 0.000000e+00 : f32
    %289 = vector.broadcast %cst_81 : f32 to vector<16x128xf32>
    %290 = arith.maximumf %288, %289 : vector<16x128xf32>
    %291 = arith.maximumf %283, %290 : vector<16x128xf32>
    %292 = vector.extract_strided_slice %243 {offsets = [96, 0], sizes = [16, 128], strides = [1, 1]} : vector<128x256xf32> to vector<16x128xf32>
    %293 = vector.extract_strided_slice %243 {offsets = [16, 128], sizes = [16, 128], strides = [1, 1]} : vector<128x256xf32> to vector<16x128xf32>
    %294 = arith.addf %292, %293 : vector<16x128xf32>
    %295 = vector.broadcast %244 : vector<1x128xf32> to vector<16x128xf32>
    %296 = arith.addf %294, %295 : vector<16x128xf32>
    %cst_82 = arith.constant 0.000000e+00 : f32
    %297 = vector.broadcast %cst_82 : f32 to vector<16x128xf32>
    %298 = arith.maximumf %296, %297 : vector<16x128xf32>
    %299 = arith.maximumf %291, %298 : vector<16x128xf32>
    %300 = vector.extract_strided_slice %243 {offsets = [112, 0], sizes = [16, 128], strides = [1, 1]} : vector<128x256xf32> to vector<16x128xf32>
    %301 = vector.extract_strided_slice %243 {offsets = [0, 128], sizes = [16, 128], strides = [1, 1]} : vector<128x256xf32> to vector<16x128xf32>
    %302 = arith.addf %300, %301 : vector<16x128xf32>
    %303 = vector.broadcast %244 : vector<1x128xf32> to vector<16x128xf32>
    %304 = arith.addf %302, %303 : vector<16x128xf32>
    %cst_83 = arith.constant 0.000000e+00 : f32
    %305 = vector.broadcast %cst_83 : f32 to vector<16x128xf32>
    %306 = arith.maximumf %304, %305 : vector<16x128xf32>
    %307 = arith.maximumf %299, %306 : vector<16x128xf32>
    %308 = arith.truncf %238 : vector<16x64xf32> to vector<16x64xbf16>
    %c0_84 = arith.constant 0 : index
    %c0_85 = arith.constant 0 : index
    %309 = vector.load %arg8[%c0_84, %c0_85] : memref<64x64xbf16, #tpu.memory_space<vmem>>, vector<64x64xbf16>
    %cst_86 = arith.constant dense<0.000000e+00> : vector<16x64xf32>
    %310 = tpu.matmul %308, %309, %cst_86 {dimension_numbers = #tpu.dot_dimension_numbers<[1], [0], [0], [1], [0, 0, 1, 1], [], []>} : vector<16x64xbf16>, vector<64x64xbf16>, vector<16x64xf32> -> vector<16x64xf32>
    %311 = arith.truncf %307 : vector<16x128xf32> to vector<16x128xbf16>
    %c0_87 = arith.constant 0 : index
    %c0_88 = arith.constant 0 : index
    %312 = vector.load %arg9[%c0_87, %c0_88] : memref<128x64xbf16, #tpu.memory_space<vmem>>, vector<128x64xbf16>
    %cst_89 = arith.constant dense<0.000000e+00> : vector<16x64xf32>
    %313 = tpu.matmul %311, %312, %cst_89 {dimension_numbers = #tpu.dot_dimension_numbers<[1], [0], [0], [1], [0, 0, 1, 1], [], []>} : vector<16x128xbf16>, vector<128x64xbf16>, vector<16x64xf32> -> vector<16x64xf32>
    %314 = arith.addf %310, %313 : vector<16x64xf32>
    %c0_90 = arith.constant 0 : index
    %c0_91 = arith.constant 0 : index
    %315 = vector.load %arg10[%c0_90, %c0_91] : memref<1x64xf32, #tpu.memory_space<vmem>>, vector<1x64xf32>
    %316 = vector.broadcast %315 : vector<1x64xf32> to vector<16x64xf32>
    %317 = arith.addf %314, %316 : vector<16x64xf32>
    %cst_92 = arith.constant 0.000000e+00 : f32
    %318 = vector.broadcast %cst_92 : f32 to vector<16x64xf32>
    %319 = arith.maximumf %317, %318 : vector<16x64xf32>
    %320 = arith.truncf %319 : vector<16x64xf32> to vector<16x64xbf16>
    %c0_93 = arith.constant 0 : index
    %c0_94 = arith.constant 0 : index
    %321 = vector.load %arg11[%c0_93, %c0_94] : memref<64x128xbf16, #tpu.memory_space<vmem>>, vector<64x128xbf16>
    %cst_95 = arith.constant dense<0.000000e+00> : vector<16x128xf32>
    %322 = tpu.matmul %320, %321, %cst_95 {dimension_numbers = #tpu.dot_dimension_numbers<[1], [0], [0], [1], [0, 0, 1, 1], [], []>} : vector<16x64xbf16>, vector<64x128xbf16>, vector<16x128xf32> -> vector<16x128xf32>
    %c0_96 = arith.constant 0 : index
    %c0_97 = arith.constant 0 : index
    %323 = vector.load %arg12[%c0_96, %c0_97] : memref<1x128xf32, #tpu.memory_space<vmem>>, vector<1x128xf32>
    %324 = vector.broadcast %323 : vector<1x128xf32> to vector<16x128xf32>
    %325 = arith.addf %322, %324 : vector<16x128xf32>
    %c0_98 = arith.constant 0 : index
    %c0_99 = arith.constant 0 : index
    %326 = vector.load %arg13[%c0_98, %c0_99] : memref<16x128xf32, #tpu.memory_space<vmem>>, vector<16x128xf32>
    tpu.vector_store %arg13[%c0_98, %c0_99], %325 {strides = array<i32>} : memref<16x128xf32, #tpu.memory_space<vmem>>, vector<16x128xf32>,
    return
  }
  func.func @transform_0(%arg0: i32) -> (i32, i32) {
    %c0_i32 = arith.constant 0 : i32
    %c0_i32_0 = arith.constant 0 : i32
    return %arg0, %c0_i32 : i32, i32
  }
  func.func @transform_1(%arg0: i32) -> (i32, i32) {
    %c0_i32 = arith.constant 0 : i32
    %c0_i32_0 = arith.constant 0 : i32
    %c0_i32_1 = arith.constant 0 : i32
    return %c0_i32, %c0_i32_0 : i32, i32
  }
  func.func @transform_2(%arg0: i32) -> (i32, i32) {
    %c0_i32 = arith.constant 0 : i32
    %c0_i32_0 = arith.constant 0 : i32
    %c0_i32_1 = arith.constant 0 : i32
    return %c0_i32, %c0_i32_0 : i32, i32
  }
  func.func @transform_3(%arg0: i32) -> (i32, i32) {
    %c0_i32 = arith.constant 0 : i32
    %c0_i32_0 = arith.constant 0 : i32
    %c0_i32_1 = arith.constant 0 : i32
    return %c0_i32, %c0_i32_0 : i32, i32
  }
  func.func @transform_4(%arg0: i32) -> (i32, i32) {
    %c0_i32 = arith.constant 0 : i32
    %c0_i32_0 = arith.constant 0 : i32
    %c0_i32_1 = arith.constant 0 : i32
    return %c0_i32, %c0_i32_0 : i32, i32
  }
  func.func @transform_5(%arg0: i32) -> (i32, i32) {
    %c0_i32 = arith.constant 0 : i32
    %c0_i32_0 = arith.constant 0 : i32
    %c0_i32_1 = arith.constant 0 : i32
    return %c0_i32, %c0_i32_0 : i32, i32
  }
  func.func @transform_6(%arg0: i32) -> (i32, i32) {
    %c0_i32 = arith.constant 0 : i32
    %c0_i32_0 = arith.constant 0 : i32
    %c0_i32_1 = arith.constant 0 : i32
    return %c0_i32, %c0_i32_0 : i32, i32
  }
  func.func @transform_7(%arg0: i32) -> (i32, i32) {
    %c0_i32 = arith.constant 0 : i32
    %c0_i32_0 = arith.constant 0 : i32
    %c0_i32_1 = arith.constant 0 : i32
    return %c0_i32, %c0_i32_0 : i32, i32
  }
  func.func @transform_8(%arg0: i32) -> (i32, i32) {
    %c0_i32 = arith.constant 0 : i32
    %c0_i32_0 = arith.constant 0 : i32
    %c0_i32_1 = arith.constant 0 : i32
    return %c0_i32, %c0_i32_0 : i32, i32
  }
  func.func @transform_9(%arg0: i32) -> (i32, i32) {
    %c0_i32 = arith.constant 0 : i32
    %c0_i32_0 = arith.constant 0 : i32
    %c0_i32_1 = arith.constant 0 : i32
    return %c0_i32, %c0_i32_0 : i32, i32
  }
  func.func @transform_10(%arg0: i32) -> (i32, i32) {
    %c0_i32 = arith.constant 0 : i32
    %c0_i32_0 = arith.constant 0 : i32
    %c0_i32_1 = arith.constant 0 : i32
    return %c0_i32, %c0_i32_0 : i32, i32
  }
  func.func @transform_11(%arg0: i32) -> (i32, i32) {
    %c0_i32 = arith.constant 0 : i32
    %c0_i32_0 = arith.constant 0 : i32
    %c0_i32_1 = arith.constant 0 : i32
    return %c0_i32, %c0_i32_0 : i32, i32
  }
  func.func @transform_12(%arg0: i32) -> (i32, i32) {
    %c0_i32 = arith.constant 0 : i32
    %c0_i32_0 = arith.constant 0 : i32
    return %arg0, %c0_i32 : i32, i32
  }
}

</mosaic_0001>

<llo_original>
// kernel: tpu_custom_call.1
$region0: #{tpu_custom_call.1}
  #allocation0 [shape = 'u32[]', space=smem, size = 0x4, offset = 0x4, fixed_abs, tag = 'smem constant byte address 0x4 - core index']
  #allocation1 [shape = 'u32[144,128]{1,0:T(1,128)}', space=vmem, size = 0x12000, scoped, tag = 'internal scratch']
  #allocation2 [shape = 'f32[128,192]{1,0:T(8,128)}', space=vmem, size = 0x20000, scoped, tag = 'scratch operand']
  #allocation3 [shape = 'bf16[128,64]{1,0:T(8,128)(2,1)}', space=vmem, size = 0x8000, scoped, tag = 'scratch operand']
  %s0 = inlined_call_operand.vmem [shape: bf16[128,16], index: 0, kind: input, shape index: {}]
  %s1 = inlined_call_operand.hbm [shape: bf16[16,192], index: 1, kind: input, shape index: {}]
  %s2 = inlined_call_operand.vmem [shape: f32[1,192], index: 2, kind: input, shape index: {}]
  %s3 = inlined_call_operand.vmem [shape: bf16[64,192], index: 3, kind: input, shape index: {}]
  %s4 = inlined_call_operand.vmem [shape: f32[1,64], index: 4, kind: input, shape index: {}]
  %s5 = inlined_call_operand.vmem [shape: bf16[64,256], index: 5, kind: input, shape index: {}]
  %s6 = inlined_call_operand.vmem [shape: f32[1,128], index: 6, kind: input, shape index: {}]
  %s7 = inlined_call_operand.hbm [shape: bf16[64,64], index: 7, kind: input, shape index: {}]
  %s8 = inlined_call_operand.vmem [shape: bf16[128,64], index: 8, kind: input, shape index: {}]
  %s9 = inlined_call_operand.vmem [shape: f32[1,64], index: 9, kind: input, shape index: {}]
  %s10 = inlined_call_operand.hbm [shape: bf16[64,128], index: 10, kind: input, shape index: {}]
  %s11 = inlined_call_operand.vmem [shape: f32[1,128], index: 11, kind: input, shape index: {}]
  %s12 = inlined_call_operand.hbm [shape: f32[16,128], index: 12, kind: output, shape index: {}]
  %s13 = sld [smem:[#allocation0]]
  $region70: #{tpu_custom_call.1} parent=0
    _
  %s15 = ssub.s32 1, %s13
  %s16 = scalar_select 0, %s15, %s13
  $region1: #{tpu_custom_call.1} parent=0
    #allocation4 [shape = 'u8[8192]{0}', space=vmem, size = 0x2000, scoped, tag = 'input window, operand 1, single buffered']
    #allocation5 [shape = 's32[1]{0}', space=sflag, size = 0x4, scoped, tag = 'scoped memory for tpu_custom_call.1']
    #allocation6 [shape = 's32[1]{0}', space=sflag, size = 0x4, scoped, tag = 'scoped memory for tpu_custom_call.1']
    #allocation7 [shape = 'u8[16384]{0}', space=vmem, size = 0x4000, scoped, tag = 'input window, operand 7, single buffered']
    #allocation8 [shape = 's32[1]{0}', space=sflag, size = 0x4, scoped, tag = 'scoped memory for tpu_custom_call.1']
    #allocation9 [shape = 'u8[16384]{0}', space=vmem, size = 0x4000, scoped, tag = 'input window, operand 10, single buffered']
    #allocation10 [shape = 'u8[8192]{0}', space=vmem, size = 0x2000, scoped, tag = 'output window, operand 0, single buffered']
    %17 = vsyncpa [#allocation5], 0
    %18 = vsyncpa [#allocation8], 0
    %19 = vsyncpa [#allocation6], 0
    // Predicated region
    $region2: #{tpu_custom_call.1} parent=1 // pred_check
      _
    $region3: #{tpu_custom_call.1} parent=1 // pred_check_branch
      %21 = sbr.rel (0) target = $region5
    $region4: #{tpu_custom_call.1} parent=1 // pred_region
      _
    $region5: #{tpu_custom_call.1} parent=1 // pred_fallthru
      _
    // Predicated region
    $region6: #{tpu_custom_call.1} parent=1 // pred_check
      _
    $region7: #{tpu_custom_call.1} parent=1 // pred_check_branch
      %23 = sbr.rel (0) target = $region9
    $region8: #{tpu_custom_call.1} parent=1 // pred_region
      %s25 = ssub.s32 256, 256
      %26 = vsyncadd [#allocation5], %s25
      %s27 = sshll.u32 [#allocation4], 4
      %s28 = int_to_ptr.vmem [resolvable:$true] %s27
      %33 = dma.hbm_to_vmem [thread:$0]  %s1, 256, %s28, [#allocation5], 128, 128, 8
    $region9: #{tpu_custom_call.1} parent=1 // pred_fallthru
      _
    // Predicated region
    $region10: #{tpu_custom_call.1} parent=1 // pred_check
      _
    $region11: #{tpu_custom_call.1} parent=1 // pred_check_branch
      %35 = sbr.rel (0) target = $region13
    $region12: #{tpu_custom_call.1} parent=1 // pred_region
      _
    $region13: #{tpu_custom_call.1} parent=1 // pred_fallthru
      _
    // Predicated region
    $region14: #{tpu_custom_call.1} parent=1 // pred_check
      _
    $region15: #{tpu_custom_call.1} parent=1 // pred_check_branch
      %37 = sbr.rel (0) target = $region17
    $region16: #{tpu_custom_call.1} parent=1 // pred_region
      _
    $region17: #{tpu_custom_call.1} parent=1 // pred_fallthru
      _
    // Predicated region
    $region18: #{tpu_custom_call.1} parent=1 // pred_check
      _
    $region19: #{tpu_custom_call.1} parent=1 // pred_check_branch
      %39 = sbr.rel (0) target = $region21
    $region20: #{tpu_custom_call.1} parent=1 // pred_region
      _
    $region21: #{tpu_custom_call.1} parent=1 // pred_fallthru
      _
    // Predicated region
    $region22: #{tpu_custom_call.1} parent=1 // pred_check
      _
    $region23: #{tpu_custom_call.1} parent=1 // pred_check_branch
      %41 = sbr.rel (0) target = $region25
    $region24: #{tpu_custom_call.1} parent=1 // pred_region
      _
    $region25: #{tpu_custom_call.1} parent=1 // pred_fallthru
      _
    // Predicated region
    $region26: #{tpu_custom_call.1} parent=1 // pred_check
      _
    $region27: #{tpu_custom_call.1} parent=1 // pred_check_branch
      %43 = sbr.rel (0) target = $region29
    $region28: #{tpu_custom_call.1} parent=1 // pred_region
      _
    $region29: #{tpu_custom_call.1} parent=1 // pred_fallthru
      _
    // Predicated region
    $region30: #{tpu_custom_call.1} parent=1 // pred_check
      _
    $region31: #{tpu_custom_call.1} parent=1 // pred_check_branch
      %45 = sbr.rel (0) target = $region33
    $region32: #{tpu_custom_call.1} parent=1 // pred_region
      %s47 = ssub.s32 512, 512
      %48 = vsyncadd [#allocation8], %s47
      %s49 = sshll.u32 [#allocation7], 4
      %s50 = int_to_ptr.vmem [resolvable:$true] %s49
      %55 = dma.hbm_to_vmem [thread:$0]  %s7, 512, %s50, [#allocation8], 64, 64, 4
    $region33: #{tpu_custom_call.1} parent=1 // pred_fallthru
      _
    // Predicated region
    $region34: #{tpu_custom_call.1} parent=1 // pred_check
      _
    $region35: #{tpu_custom_call.1} parent=1 // pred_check_branch
      %57 = sbr.rel (0) target = $region37
    $region36: #{tpu_custom_call.1} parent=1 // pred_region
      _
    $region37: #{tpu_custom_call.1} parent=1 // pred_fallthru
      _
    // Predicated region
    $region38: #{tpu_custom_call.1} parent=1 // pred_check
      _
    $region39: #{tpu_custom_call.1} parent=1 // pred_check_branch
      %59 = sbr.rel (0) target = $region41
    $region40: #{tpu_custom_call.1} parent=1 // pred_region
      _
    $region41: #{tpu_custom_call.1} parent=1 // pred_fallthru
      _
    // Predicated region
    $region42: #{tpu_custom_call.1} parent=1 // pred_check
      _
    $region43: #{tpu_custom_call.1} parent=1 // pred_check_branch
      %61 = sbr.rel (0) target = $region45
    $region44: #{tpu_custom_call.1} parent=1 // pred_region
      %s63 = ssub.s32 512, 512
      %64 = vsyncadd [#allocation8], %s63
      %s65 = sshll.u32 [#allocation9], 4
      %s66 = int_to_ptr.vmem [resolvable:$true] %s65
      %71 = dma.hbm_to_vmem [thread:$0]  %s10, 512, %s66, [#allocation8], 64, 64, 4
    $region45: #{tpu_custom_call.1} parent=1 // pred_fallthru
      _
    // Predicated region
    $region46: #{tpu_custom_call.1} parent=1 // pred_check
      _
    $region47: #{tpu_custom_call.1} parent=1 // pred_check_branch
      %73 = sbr.rel (0) target = $region49
    $region48: #{tpu_custom_call.1} parent=1 // pred_region
      _
    $region49: #{tpu_custom_call.1} parent=1 // pred_fallthru
      _
    // Predicated region
    $region50: #{tpu_custom_call.1} parent=1 // pred_check
      _
    $region51: #{tpu_custom_call.1} parent=1 // pred_check_branch
      %75 = sbr.rel (0) target = $region53
    $region52: #{tpu_custom_call.1} parent=1 // pred_region
      %76 = dma.done [#allocation5], 256
    $region53: #{tpu_custom_call.1} parent=1 // pred_fallthru
      _
    // Predicated region
    $region54: #{tpu_custom_call.1} parent=1 // pred_check
      _
    $region55: #{tpu_custom_call.1} parent=1 // pred_check_branch
      %78 = sbr.rel (0) target = $region57
    $region56: #{tpu_custom_call.1} parent=1 // pred_region
      %79 = dma.done [#allocation8], 512
    $region57: #{tpu_custom_call.1} parent=1 // pred_fallthru
      _
    // Predicated region
    $region58: #{tpu_custom_call.1} parent=1 // pred_check
      _
    $region59: #{tpu_custom_call.1} parent=1 // pred_check_branch
      %81 = sbr.rel (0) target = $region61
    $region60: #{tpu_custom_call.1} parent=1 // pred_region
      %82 = dma.done [#allocation8], 512
    $region61: #{tpu_custom_call.1} parent=1 // pred_fallthru
      _
    %v84 = vld [vmem:[%s0] sm:$0xf]
    %v85 = vld [vmem:[%s0 + $0x4] sm:$0xf]
    %v86 = vld [vmem:[%s0 + $0x8] sm:$0xf]
    %v87 = vld [vmem:[%s0 + $0xc] sm:$0xf]
    %v88 = vld [vmem:[%s0 + $0x10] sm:$0xf]
    %v89 = vld [vmem:[%s0 + $0x14] sm:$0xf]
    %v90 = vld [vmem:[%s0 + $0x18] sm:$0xf]
    %v91 = vld [vmem:[%s0 + $0x1c] sm:$0xf]
    %v92 = vld [vmem:[%s0 + $0x20] sm:$0xf]
    %v93 = vld [vmem:[%s0 + $0x24] sm:$0xf]
    %v94 = vld [vmem:[%s0 + $0x28] sm:$0xf]
    %v95 = vld [vmem:[%s0 + $0x2c] sm:$0xf]
    %v96 = vld [vmem:[%s0 + $0x30] sm:$0xf]
    %v97 = vld [vmem:[%s0 + $0x34] sm:$0xf]
    %v98 = vld [vmem:[%s0 + $0x38] sm:$0xf]
    %v99 = vld [vmem:[%s0 + $0x3c] sm:$0xf]
    %v100 = vld [vmem:[#allocation4] sm:$0xff]
    %v101 = vld [vmem:[#allocation4 + $0x8] sm:$0xff]
    %v102 = vld [vmem:[%s2] sm:$0x3]
    %v104 = vlaneseq
    %v105 = vshrl.u32 %v104, 7
    %v106 = vsub.s32 0, %v105
    %v107 = vrot.slane %v102, %v106
    %v108 = vlaneseq
    %v109 = vshrl.u32 %v108, 7
    %v110 = vsub.s32 1, %v109
    %v111 = vrot.slane %v102, %v110
    %v130 = vunpack.c.l.b16 %v84
    %v131 = vunpack.c.l.b16 %v85
    %v132 = vunpack.c.l.b16 %v86
    %v133 = vunpack.c.l.b16 %v87
    %v134 = vunpack.c.l.b16 %v88
    %v135 = vunpack.c.l.b16 %v89
    %v136 = vunpack.c.l.b16 %v90
    %v137 = vunpack.c.l.b16 %v91
    %v138 = vunpack.c.l.b16 %v92
    %v139 = vunpack.c.l.b16 %v93
    %v140 = vunpack.c.l.b16 %v94
    %v141 = vunpack.c.l.b16 %v95
    %v142 = vunpack.c.l.b16 %v96
    %v143 = vunpack.c.l.b16 %v97
    %v144 = vunpack.c.l.b16 %v98
    %v145 = vunpack.c.l.b16 %v99
    %v146 = vpack.c.b16 %v131, %v130
    %v147 = vpack.c.b16 %v133, %v132
    %v148 = vpack.c.b16 %v135, %v134
    %v149 = vpack.c.b16 %v137, %v136
    %v150 = vpack.c.b16 %v139, %v138
    %v151 = vpack.c.b16 %v141, %v140
    %v152 = vpack.c.b16 %v143, %v142
    %v153 = vpack.c.b16 %v145, %v144
    %v156 = vunpack.c.l.b16 %v100
    %v157 = vunpack.c.h.b16 %v100
    %v158 = vunpack.c.l.b16 %v101
    %v159 = vunpack.c.h.b16 %v101
    %v160 = vpack.c.b16 %v158, %v156
    %v161 = vpack.c.b16 %v159, %v157
    %vm164 = vcmask 130048
    %v166 = vsel %vm164, %v146, 0
    %v169 = vsel %vm164, %v147, 0
    %v172 = vsel %vm164, %v148, 0
    %v175 = vsel %vm164, %v149, 0
    %v178 = vsel %vm164, %v150, 0
    %v181 = vsel %vm164, %v151, 0
    %v184 = vsel %vm164, %v152, 0
    %v187 = vsel %vm164, %v153, 0
    %189 = vmatprep.subr.bf16.mxu0 0
    %190 = vmatpush1.bf16.msra.mxu0 0
    %191 = vmatprep.subr.bf16.mxu0 0
    %192 = vmatpush1.bf16.msra.mxu0 0
    %193 = vmatprep.subr.bf16.mxu0 0
    %194 = vmatpush1.bf16.msra.mxu0 0
    %195 = vmatprep.subr.bf16.mxu0 0
    %196 = vmatpush1.bf16.msra.mxu0 0
    %197 = vmatprep.subr.bf16.mxu0 0
    %198 = vmatpush1.bf16.msra.mxu0 0
    %199 = vmatprep.subr.bf16.mxu0 0
    %200 = vmatpush1.bf16.msra.mxu0 0
    %201 = vmatprep.subr.bf16.mxu0 0
    %202 = vmatpush1.bf16.msra.mxu0 0
    %203 = vmatprep.subr.bf16.mxu0 %v161
    %204 = vmatpush1.bf16.msra.mxu0 %v160
    %205 = vmatprep.subr.bf16.mxu0 0
    %206 = vmatpush2.bf16.msra.mxu0 0
    %207 = vmatprep.subr.bf16.mxu0 0
    %208 = vmatpush2.bf16.msra.mxu0 0
    %209 = vmatprep.subr.bf16.mxu0 0
    %210 = vmatpush2.bf16.msra.mxu0 0
    %211 = vmatprep.subr.bf16.mxu0 0
    %212 = vmatpush2.bf16.msra.mxu0 0
    %213 = vmatprep.subr.bf16.mxu0 0
    %214 = vmatpush2.bf16.msra.mxu0 0
    %215 = vmatprep.subr.bf16.mxu0 0
    %216 = vmatpush2.bf16.msra.mxu0 0
    %217 = vmatprep.subr.bf16.mxu0 0
    %218 = vmatpush2.bf16.msra.mxu0 0
    %219 = vmatprep.subr.bf16.mxu0 0
    %220 = vmatpush2.bf16.msra.mxu0 0
    %221 = vmatprep.mubr.bf16.mxu0 0
    %222 = vmatmul.mubr.bf16.gmra.mxu0 %v166
    %v223 = vpop.f32.mrf.mxu0
    %v224 = vadd.f32 %v107, %v223
    %v225 = vpop.f32.mrf.mxu0
    %v226 = vadd.f32 %v111, %v225
    %v227 = vpop.f32.mrf.mxu0
    %v228 = vadd.f32 %v107, %v227
    %v229 = vpop.f32.mrf.mxu0
    %v230 = vadd.f32 %v111, %v229
    %231 = vmatprep.mubr.bf16.mxu0 0
    %232 = vmatmul.mubr.bf16.gmra.mxu0 %v169
    %v233 = vpop.f32.mrf.mxu0
    %v234 = vadd.f32 %v107, %v233
    %v235 = vpop.f32.mrf.mxu0
    %v236 = vadd.f32 %v111, %v235
    %v237 = vpop.f32.mrf.mxu0
    %v238 = vadd.f32 %v107, %v237
    %v239 = vpop.f32.mrf.mxu0
    %v240 = vadd.f32 %v111, %v239
    %241 = vmatprep.mubr.bf16.mxu0 0
    %242 = vmatmul.mubr.bf16.gmra.mxu0 %v172
    %v243 = vpop.f32.mrf.mxu0
    %v244 = vadd.f32 %v107, %v243
    %v245 = vpop.f32.mrf.mxu0
    %v246 = vadd.f32 %v111, %v245
    %v247 = vpop.f32.mrf.mxu0
    %v248 = vadd.f32 %v107, %v247
    %v249 = vpop.f32.mrf.mxu0
    %v250 = vadd.f32 %v111, %v249
    %251 = vmatprep.mubr.bf16.mxu0 0
    %252 = vmatmul.mubr.bf16.gmra.mxu0 %v175
    %v253 = vpop.f32.mrf.mxu0
    %v254 = vadd.f32 %v107, %v253
    %v255 = vpop.f32.mrf.mxu0
    %v256 = vadd.f32 %v111, %v255
    %v257 = vpop.f32.mrf.mxu0
    %v258 = vadd.f32 %v107, %v257
    %v259 = vpop.f32.mrf.mxu0
    %v260 = vadd.f32 %v111, %v259
    %261 = vmatprep.mubr.bf16.mxu0 0
    %262 = vmatmul.mubr.bf16.gmra.mxu0 %v178
    %v263 = vpop.f32.mrf.mxu0
    %v264 = vadd.f32 %v107, %v263
    %v265 = vpop.f32.mrf.mxu0
    %v266 = vadd.f32 %v111, %v265
    %v267 = vpop.f32.mrf.mxu0
    %v268 = vadd.f32 %v107, %v267
    %v269 = vpop.f32.mrf.mxu0
    %v270 = vadd.f32 %v111, %v269
    %271 = vmatprep.mubr.bf16.mxu0 0
    %272 = vmatmul.mubr.bf16.gmra.mxu0 %v181
    %v273 = vpop.f32.mrf.mxu0
    %v274 = vadd.f32 %v107, %v273
    %v275 = vpop.f32.mrf.mxu0
    %v276 = vadd.f32 %v111, %v275
    %v277 = vpop.f32.mrf.mxu0
    %v278 = vadd.f32 %v107, %v277
    %v279 = vpop.f32.mrf.mxu0
    %v280 = vadd.f32 %v111, %v279
    %281 = vmatprep.mubr.bf16.mxu0 0
    %282 = vmatmul.mubr.bf16.gmra.mxu0 %v184
    %v283 = vpop.f32.mrf.mxu0
    %v284 = vadd.f32 %v107, %v283
    %v285 = vpop.f32.mrf.mxu0
    %v286 = vadd.f32 %v111, %v285
    %v287 = vpop.f32.mrf.mxu0
    %v288 = vadd.f32 %v107, %v287
    %v289 = vpop.f32.mrf.mxu0
    %v290 = vadd.f32 %v111, %v289
    %291 = vmatprep.mubr.bf16.mxu0 0
    %292 = vmatmul.mubr.bf16.gmra.mxu0 %v187
    %v293 = vpop.f32.mrf.mxu0
    %v294 = vadd.f32 %v107, %v293
    %v295 = vpop.f32.mrf.mxu0
    %v296 = vadd.f32 %v111, %v295
    %v297 = vpop.f32.mrf.mxu0
    %v298 = vadd.f32 %v107, %v297
    %v299 = vpop.f32.mrf.mxu0
    %v300 = vadd.f32 %v111, %v299
    %301 = vdwg.mxu0
    %302 = vst [vmem:[#allocation2] sm:$0xff] %v224
    %vm303 = vcmask 523264
    %304 = vst.msk [vmem:[#allocation2 + $0x8] sm:$0xff] %vm303, %v226
    %305 = vst [vmem:[#allocation2 + $0x10] sm:$0xff] %v228
    %306 = vst.msk [vmem:[#allocation2 + $0x18] sm:$0xff] %vm303, %v230
    %307 = vst [vmem:[#allocation2 + $0x20] sm:$0xff] %v234
    %308 = vst.msk [vmem:[#allocation2 + $0x28] sm:$0xff] %vm303, %v236
    %309 = vst [vmem:[#allocation2 + $0x30] sm:$0xff] %v238
    %310 = vst.msk [vmem:[#allocation2 + $0x38] sm:$0xff] %vm303, %v240
    %311 = vst [vmem:[#allocation2 + $0x40] sm:$0xff] %v244
    %312 = vst.msk [vmem:[#allocation2 + $0x48] sm:$0xff] %vm303, %v246
    %313 = vst [vmem:[#allocation2 + $0x50] sm:$0xff] %v248
    %314 = vst.msk [vmem:[#allocation2 + $0x58] sm:$0xff] %vm303, %v250
    %315 = vst [vmem:[#allocation2 + $0x60] sm:$0xff] %v254
    %316 = vst.msk [vmem:[#allocation2 + $0x68] sm:$0xff] %vm303, %v256
    %317 = vst [vmem:[#allocation2 + $0x70] sm:$0xff] %v258
    %318 = vst.msk [vmem:[#allocation2 + $0x78] sm:$0xff] %vm303, %v260
    %319 = vst [vmem:[#allocation2 + $0x80] sm:$0xff] %v264
    %320 = vst.msk [vmem:[#allocation2 + $0x88] sm:$0xff] %vm303, %v266
    %321 = vst [vmem:[#allocation2 + $0x90] sm:$0xff] %v268
    %322 = vst.msk [vmem:[#allocation2 + $0x98] sm:$0xff] %vm303, %v270
    %323 = vst [vmem:[#allocation2 + $0xa0] sm:$0xff] %v274
    %324 = vst.msk [vmem:[#allocation2 + $0xa8] sm:$0xff] %vm303, %v276
    %325 = vst [vmem:[#allocation2 + $0xb0] sm:$0xff] %v278
    %326 = vst.msk [vmem:[#allocation2 + $0xb8] sm:$0xff] %vm303, %v280
    %327 = vst [vmem:[#allocation2 + $0xc0] sm:$0xff] %v284
    %328 = vst.msk [vmem:[#allocation2 + $0xc8] sm:$0xff] %vm303, %v286
    %329 = vst [vmem:[#allocation2 + $0xd0] sm:$0xff] %v288
    %330 = vst.msk [vmem:[#allocation2 + $0xd8] sm:$0xff] %vm303, %v290
    %331 = vst [vmem:[#allocation2 + $0xe0] sm:$0xff] %v294
    %332 = vst.msk [vmem:[#allocation2 + $0xe8] sm:$0xff] %vm303, %v296
    %333 = vst [vmem:[#allocation2 + $0xf0] sm:$0xff] %v298
    %334 = vst.msk [vmem:[#allocation2 + $0xf8] sm:$0xff] %vm303, %v300
    %v335 = vld [vmem:[%s3] sm:$0xff]
    %v336 = vld [vmem:[%s3 + $0x8] sm:$0xff]
    %v337 = vld [vmem:[%s3 + $0x10] sm:$0xff]
    %v338 = vld [vmem:[%s3 + $0x18] sm:$0xff]
    %v339 = vld [vmem:[%s3 + $0x20] sm:$0xff]
    %v340 = vld [vmem:[%s3 + $0x28] sm:$0xff]
    %v341 = vld [vmem:[%s3 + $0x30] sm:$0xff]
    %v342 = vld [vmem:[%s3 + $0x38] sm:$0xff]
    %v343 = vld [vmem:[%s4] sm:$0x1]
    %v344 = vlaneseq
    %v345 = vand.u32 %v344, 127
    %v346 = vadd.s32 %v345, 128
    %vm347 = vcmp.lt.s32.totalorder %v345, 32
    %vm348 = vcmp.lt.s32.totalorder %v346, 32
    %vm349 = vcmp.ge.s32.totalorder %v345, 64
    %vm350 = vcmp.ge.s32.totalorder %v346, 64
    %vm351 = vcmp.lt.s32.totalorder %v345, 96
    %vm352 = vcmp.lt.s32.totalorder %v346, 96
    %vm353 = vmand %vm349, %vm351
    %vm354 = vmand %vm350, %vm352
    %vm355 = vmor %vm347, %vm353
    %vm356 = vmor %vm348, %vm354
    %vm357 = vcmp.ge.s32.totalorder %v345, 128
    %vm358 = vcmp.ge.s32.totalorder %v346, 128
    %vm359 = vcmp.lt.s32.totalorder %v345, 160
    %vm360 = vcmp.lt.s32.totalorder %v346, 160
    %vm361 = vmand %vm357, %vm359
    %vm362 = vmand %vm358, %vm360
    %vm363 = vmor %vm355, %vm361
    %vm364 = vmor %vm356, %vm362
    %v365 = vld [vmem:[#allocation2] sm:$0xff]
    %v366 = vld [vmem:[#allocation2 + $0x8] sm:$0xff]
    %v367 = vld [vmem:[#allocation2 + $0x10] sm:$0xff]
    %v368 = vld [vmem:[#allocation2 + $0x18] sm:$0xff]
    %v369 = vld [vmem:[#allocation2 + $0xe0] sm:$0xff]
    %v370 = vld [vmem:[#allocation2 + $0xe8] sm:$0xff]
    %v371 = vld [vmem:[#allocation2 + $0xf0] sm:$0xff]
    %v372 = vld [vmem:[#allocation2 + $0xf8] sm:$0xff]
    %v373 = vsel %vm363, %v365, %v369
    %v374 = vsel %vm364, %v366, %v370
    %v375 = vsel %vm363, %v367, %v371
    %v376 = vsel %vm364, %v368, %v372
    %v385 = vunpack.c.l.b16 %v335
    %v386 = vunpack.c.h.b16 %v335
    %v387 = vunpack.c.l.b16 %v336
    %v388 = vunpack.c.h.b16 %v336
    %v389 = vunpack.c.l.b16 %v337
    %v390 = vunpack.c.h.b16 %v337
    %v391 = vunpack.c.l.b16 %v338
    %v392 = vunpack.c.h.b16 %v338
    %v393 = vunpack.c.l.b16 %v339
    %v394 = vunpack.c.h.b16 %v339
    %v395 = vunpack.c.l.b16 %v340
    %v396 = vunpack.c.h.b16 %v340
    %v397 = vunpack.c.l.b16 %v341
    %v398 = vunpack.c.h.b16 %v341
    %v399 = vunpack.c.l.b16 %v342
    %v400 = vunpack.c.h.b16 %v342
    %v401 = vpack.c.b16 %v387, %v385
    %v402 = vpack.c.b16 %v388, %v386
    %v403 = vpack.c.b16 %v391, %v389
    %v404 = vpack.c.b16 %v392, %v390
    %v405 = vpack.c.b16 %v395, %v393
    %v406 = vpack.c.b16 %v396, %v394
    %v407 = vpack.c.b16 %v399, %v397
    %v408 = vpack.c.b16 %v400, %v398
    %v418 = vsel %vm303, 0, 0
    %420 = vmatprep.subr.bf16.mxu0 0
    %421 = vmatpush1.bf16.msra.mxu0 0
    %422 = vmatprep.subr.bf16.mxu0 0
    %423 = vmatpush1.bf16.msra.mxu0 0
    %424 = vmatprep.subr.bf16.mxu0 0
    %425 = vmatpush1.bf16.msra.mxu0 0
    %426 = vmatprep.subr.bf16.mxu0 0
    %427 = vmatpush1.bf16.msra.mxu0 0
    %428 = vmatprep.subr.bf16.mxu0 %v408
    %429 = vmatpush1.bf16.msra.mxu0 %v407
    %430 = vmatprep.subr.bf16.mxu0 %v406
    %431 = vmatpush1.bf16.msra.mxu0 %v405
    %432 = vmatprep.subr.bf16.mxu0 %v404
    %433 = vmatpush1.bf16.msra.mxu0 %v403
    %434 = vmatprep.subr.bf16.mxu0 %v402
    %435 = vmatpush1.bf16.msra.mxu0 %v401
    %436 = vmatprep.subr.bf16.mxu0 0
    %437 = vmatpush2.bf16.msra.mxu0 0
    %438 = vmatprep.subr.bf16.mxu0 0
    %439 = vmatpush2.bf16.msra.mxu0 0
    %440 = vmatprep.subr.bf16.mxu0 0
    %441 = vmatpush2.bf16.msra.mxu0 0
    %442 = vmatprep.subr.bf16.mxu0 0
    %443 = vmatpush2.bf16.msra.mxu0 0
    %444 = vmatprep.subr.bf16.mxu0 0
    %445 = vmatpush2.bf16.msra.mxu0 0
    %446 = vmatprep.subr.bf16.mxu0 0
    %447 = vmatpush2.bf16.msra.mxu0 0
    %448 = vmatprep.subr.bf16.mxu0 0
    %449 = vmatpush2.bf16.msra.mxu0 0
    %450 = vmatprep.subr.bf16.mxu0 0
    %451 = vmatpush2.bf16.msra.mxu0 0
    %452 = vmatprep.mubr.bf16.mxu0 0
    %453 = vmatmul.mubr.bf16.gmra.mxu0 %v418
    %v454 = vpop.f32.mrf.mxu0
    %v455 = vadd.f32 0.0, %v454
    %v456 = vpop.f32.mrf.mxu0
    %v457 = vadd.f32 0.0, %v456
    %v458 = vpop.f32.mrf.mxu0
    %v459 = vadd.f32 0.0, %v458
    %v460 = vpop.f32.mrf.mxu0
    %v461 = vadd.f32 0.0, %v460
    %462 = vdwg.mxu0
    %v463 = vadd.f32 %v373, %v455
    %v464 = vadd.f32 %v375, %v459
    %v465 = vxor.u32 %v463, 2147483648
    %v466 = vxor.u32 %v464, 2147483648
    %v467 = vmul.f32 %v465, 1.442695
    %v468 = vpow.pop %v467
    %v469 = vmul.f32 %v466, 1.442695
    %v470 = vpow.pop %v469
    %v471 = vadd.f32 %v468, 1.0
    %v472 = vadd.f32 %v470, 1.0
    %v473 = vrcp.pop %v471
    %v474 = vmul.f32 1.0, %v473
    %v475 = vrcp.pop %v472
    %v476 = vmul.f32 1.0, %v475
    %v478 = vlaneseq
    %v479 = vshrl.u32 %v478, 7
    %v480 = vsub.s32 0, %v479
    %v481 = vrot.slane %v343, %v480
    %v483 = vadd.f32 %v457, %v481
    %v484 = vadd.f32 %v461, %v481
    %v485 = vmul.f32 %v474, %v483
    %v486 = vmul.f32 %v476, %v484
    %v487 = vadd.f32 %v374, %v485
    %v488 = vadd.f32 %v376, %v486
    %v489 = vtanh.pop %v487
    %v490 = vtanh.pop %v488
    %v491 = vsub.f32 0.0, %v489
    %v492 = vsub.f32 0.0, %v490
    %495 = vrot.lane.b32.xlu0 %v491, 64
    %v496 = vpop.permute.xlu0 %495
    %497 = vrot.lane.b32.xlu0 %v492, 64
    %v498 = vpop.permute.xlu0 %497
    %v501 = vmul.f32 %v474, %v496
    %v502 = vmul.f32 %v476, %v498
    %505 = vrot.lane.b32.xlu0 %v501, 64
    %v506 = vpop.permute.xlu0 %505
    %507 = vrot.lane.b32.xlu0 %v502, 64
    %v508 = vpop.permute.xlu0 %507
    %v511 = vadd.f32 %v489, %v506
    %v512 = vadd.f32 %v490, %v508
    %v513 = vpack.c.bf16 %v512, %v511
    %v515 = vunpack.c.l.b16 %v513
    %v516 = vunpack.c.h.b16 %v513
    %v517 = vpack.c.b16 %v515, %v515
    %v518 = vpack.c.b16 %v516, %v516
    %vm521 = vcmask 519168
    %522 = vst.msk [vmem:[#allocation3] sm:$0xf] %vm521, %v517
    %523 = vst.msk [vmem:[#allocation3 + $0x4] sm:$0xf] %vm521, %v518
    %v524 = vld [vmem:[#allocation2 + $0x20] sm:$0xff]
    %v525 = vld [vmem:[#allocation2 + $0x28] sm:$0xff]
    %v526 = vld [vmem:[#allocation2 + $0x30] sm:$0xff]
    %v527 = vld [vmem:[#allocation2 + $0x38] sm:$0xff]
    %v528 = vld [vmem:[#allocation2 + $0xc0] sm:$0xff]
    %v529 = vld [vmem:[#allocation2 + $0xc8] sm:$0xff]
    %v530 = vld [vmem:[#allocation2 + $0xd0] sm:$0xff]
    %v531 = vld [vmem:[#allocation2 + $0xd8] sm:$0xff]
    %v532 = vsel %vm363, %v524, %v528
    %v533 = vsel %vm364, %v525, %v529
    %v534 = vsel %vm363, %v526, %v530
    %v535 = vsel %vm364, %v527, %v531
    %v537 = vsel %vm303, %v513, 0
    %539 = vmatprep.subr.bf16.mxu0 0
    %540 = vmatpush1.bf16.msra.mxu0 0
    %541 = vmatprep.subr.bf16.mxu0 0
    %542 = vmatpush1.bf16.msra.mxu0 0
    %543 = vmatprep.subr.bf16.mxu0 0
    %544 = vmatpush1.bf16.msra.mxu0 0
    %545 = vmatprep.subr.bf16.mxu0 0
    %546 = vmatpush1.bf16.msra.mxu0 0
    %547 = vmatprep.subr.bf16.mxu0 %v408
    %548 = vmatpush1.bf16.msra.mxu0 %v407
    %549 = vmatprep.subr.bf16.mxu0 %v406
    %550 = vmatpush1.bf16.msra.mxu0 %v405
    %551 = vmatprep.subr.bf16.mxu0 %v404
    %552 = vmatpush1.bf16.msra.mxu0 %v403
    %553 = vmatprep.subr.bf16.mxu0 %v402
    %554 = vmatpush1.bf16.msra.mxu0 %v401
    %555 = vmatprep.subr.bf16.mxu0 0
    %556 = vmatpush2.bf16.msra.mxu0 0
    %557 = vmatprep.subr.bf16.mxu0 0
    %558 = vmatpush2.bf16.msra.mxu0 0
    %559 = vmatprep.subr.bf16.mxu0 0
    %560 = vmatpush2.bf16.msra.mxu0 0
    %561 = vmatprep.subr.bf16.mxu0 0
    %562 = vmatpush2.bf16.msra.mxu0 0
    %563 = vmatprep.subr.bf16.mxu0 0
    %564 = vmatpush2.bf16.msra.mxu0 0
    %565 = vmatprep.subr.bf16.mxu0 0
    %566 = vmatpush2.bf16.msra.mxu0 0
    %567 = vmatprep.subr.bf16.mxu0 0
    %568 = vmatpush2.bf16.msra.mxu0 0
    %569 = vmatprep.subr.bf16.mxu0 0
    %570 = vmatpush2.bf16.msra.mxu0 0
    %571 = vmatprep.mubr.bf16.mxu0 0
    %572 = vmatmul.mubr.bf16.gmra.mxu0 %v537
    %v573 = vpop.f32.mrf.mxu0
    %v574 = vadd.f32 0.0, %v573
    %v575 = vpop.f32.mrf.mxu0
    %v576 = vadd.f32 0.0, %v575
    %v577 = vpop.f32.mrf.mxu0
    %v578 = vadd.f32 0.0, %v577
    %v579 = vpop.f32.mrf.mxu0
    %v580 = vadd.f32 0.0, %v579
    %581 = vdwg.mxu0
    %v582 = vadd.f32 %v532, %v574
    %v583 = vadd.f32 %v534, %v578
    %v584 = vxor.u32 %v582, 2147483648
    %v585 = vxor.u32 %v583, 2147483648
    %v586 = vmul.f32 %v584, 1.442695
    %v587 = vpow.pop %v586
    %v588 = vmul.f32 %v585, 1.442695
    %v589 = vpow.pop %v588
    %v590 = vadd.f32 %v587, 1.0
    %v591 = vadd.f32 %v589, 1.0
    %v592 = vrcp.pop %v590
    %v593 = vmul.f32 1.0, %v592
    %v594 = vrcp.pop %v591
    %v595 = vmul.f32 1.0, %v594
    %v596 = vadd.f32 %v576, %v481
    %v597 = vadd.f32 %v580, %v481
    %v598 = vmul.f32 %v593, %v596
    %v599 = vmul.f32 %v595, %v597
    %v600 = vadd.f32 %v533, %v598
    %v601 = vadd.f32 %v535, %v599
    %v602 = vtanh.pop %v600
    %v603 = vtanh.pop %v601
    %v604 = vsub.f32 %v511, %v602
    %v605 = vsub.f32 %v512, %v603
    %608 = vrot.lane.b32.xlu0 %v604, 64
    %v609 = vpop.permute.xlu0 %608
    %610 = vrot.lane.b32.xlu0 %v605, 64
    %v611 = vpop.permute.xlu0 %610
    %v614 = vmul.f32 %v593, %v609
    %v615 = vmul.f32 %v595, %v611
    %618 = vrot.lane.b32.xlu0 %v614, 64
    %v619 = vpop.permute.xlu0 %618
    %620 = vrot.lane.b32.xlu0 %v615, 64
    %v621 = vpop.permute.xlu0 %620
    %v624 = vadd.f32 %v602, %v619
    %v625 = vadd.f32 %v603, %v621
    %v626 = vpack.c.bf16 %v625, %v624
    %v628 = vunpack.c.l.b16 %v626
    %v629 = vunpack.c.h.b16 %v626
    %v630 = vpack.c.b16 %v628, %v628
    %v631 = vpack.c.b16 %v629, %v629
    %634 = vst.msk [vmem:[#allocation3 + $0x8] sm:$0xf] %vm521, %v630
    %635 = vst.msk [vmem:[#allocation3 + $0xc] sm:$0xf] %vm521, %v631
    %v636 = vld [vmem:[#allocation2 + $0x40] sm:$0xff]
    %v637 = vld [vmem:[#allocation2 + $0x48] sm:$0xff]
    %v638 = vld [vmem:[#allocation2 + $0x50] sm:$0xff]
    %v639 = vld [vmem:[#allocation2 + $0x58] sm:$0xff]
    %v640 = vld [vmem:[#allocation2 + $0xa0] sm:$0xff]
    %v641 = vld [vmem:[#allocation2 + $0xa8] sm:$0xff]
    %v642 = vld [vmem:[#allocation2 + $0xb0] sm:$0xff]
    %v643 = vld [vmem:[#allocation2 + $0xb8] sm:$0xff]
    %v644 = vsel %vm363, %v636, %v640
    %v645 = vsel %vm364, %v637, %v641
    %v646 = vsel %vm363, %v638, %v642
    %v647 = vsel %vm364, %v639, %v643
    %v649 = vsel %vm303, %v626, 0
    %651 = vmatprep.subr.bf16.mxu0 0
    %652 = vmatpush1.bf16.msra.mxu0 0
    %653 = vmatprep.subr.bf16.mxu0 0
    %654 = vmatpush1.bf16.msra.mxu0 0
    %655 = vmatprep.subr.bf16.mxu0 0
    %656 = vmatpush1.bf16.msra.mxu0 0
    %657 = vmatprep.subr.bf16.mxu0 0
    %658 = vmatpush1.bf16.msra.mxu0 0
    %659 = vmatprep.subr.bf16.mxu0 %v408
    %660 = vmatpush1.bf16.msra.mxu0 %v407
    %661 = vmatprep.subr.bf16.mxu0 %v406
    %662 = vmatpush1.bf16.msra.mxu0 %v405
    %663 = vmatprep.subr.bf16.mxu0 %v404
    %664 = vmatpush1.bf16.msra.mxu0 %v403
    %665 = vmatprep.subr.bf16.mxu0 %v402
    %666 = vmatpush1.bf16.msra.mxu0 %v401
    %667 = vmatprep.subr.bf16.mxu0 0
    %668 = vmatpush2.bf16.msra.mxu0 0
    %669 = vmatprep.subr.bf16.mxu0 0
    %670 = vmatpush2.bf16.msra.mxu0 0
    %671 = vmatprep.subr.bf16.mxu0 0
    %672 = vmatpush2.bf16.msra.mxu0 0
    %673 = vmatprep.subr.bf16.mxu0 0
    %674 = vmatpush2.bf16.msra.mxu0 0
    %675 = vmatprep.subr.bf16.mxu0 0
    %676 = vmatpush2.bf16.msra.mxu0 0
    %677 = vmatprep.subr.bf16.mxu0 0
    %678 = vmatpush2.bf16.msra.mxu0 0
    %679 = vmatprep.subr.bf16.mxu0 0
    %680 = vmatpush2.bf16.msra.mxu0 0
    %681 = vmatprep.subr.bf16.mxu0 0
    %682 = vmatpush2.bf16.msra.mxu0 0
    %683 = vmatprep.mubr.bf16.mxu0 0
    %684 = vmatmul.mubr.bf16.gmra.mxu0 %v649
    %v685 = vpop.f32.mrf.mxu0
    %v686 = vadd.f32 0.0, %v685
    %v687 = vpop.f32.mrf.mxu0
    %v688 = vadd.f32 0.0, %v687
    %v689 = vpop.f32.mrf.mxu0
    %v690 = vadd.f32 0.0, %v689
    %v691 = vpop.f32.mrf.mxu0
    %v692 = vadd.f32 0.0, %v691
    %693 = vdwg.mxu0
    %v694 = vadd.f32 %v644, %v686
    %v695 = vadd.f32 %v646, %v690
    %v696 = vxor.u32 %v694, 2147483648
    %v697 = vxor.u32 %v695, 2147483648
    %v698 = vmul.f32 %v696, 1.442695
    %v699 = vpow.pop %v698
    %v700 = vmul.f32 %v697, 1.442695
    %v701 = vpow.pop %v700
    %v702 = vadd.f32 %v699, 1.0
    %v703 = vadd.f32 %v701, 1.0
    %v704 = vrcp.pop %v702
    %v705 = vmul.f32 1.0, %v704
    %v706 = vrcp.pop %v703
    %v707 = vmul.f32 1.0, %v706
    %v708 = vadd.f32 %v688, %v481
    %v709 = vadd.f32 %v692, %v481
    %v710 = vmul.f32 %v705, %v708
    %v711 = vmul.f32 %v707, %v709
    %v712 = vadd.f32 %v645, %v710
    %v713 = vadd.f32 %v647, %v711
    %v714 = vtanh.pop %v712
    %v715 = vtanh.pop %v713
    %v716 = vsub.f32 %v624, %v714
    %v717 = vsub.f32 %v625, %v715
    %720 = vrot.lane.b32.xlu0 %v716, 64
    %v721 = vpop.permute.xlu0 %720
    %722 = vrot.lane.b32.xlu0 %v717, 64
    %v723 = vpop.permute.xlu0 %722
    %v726 = vmul.f32 %v705, %v721
    %v727 = vmul.f32 %v707, %v723
    %730 = vrot.lane.b32.xlu0 %v726, 64
    %v731 = vpop.permute.xlu0 %730
    %732 = vrot.lane.b32.xlu0 %v727, 64
    %v733 = vpop.permute.xlu0 %732
    %v736 = vadd.f32 %v714, %v731
    %v737 = vadd.f32 %v715, %v733
    %v738 = vpack.c.bf16 %v737, %v736
    %v740 = vunpack.c.l.b16 %v738
    %v741 = vunpack.c.h.b16 %v738
    %v742 = vpack.c.b16 %v740, %v740
    %v743 = vpack.c.b16 %v741, %v741
    %746 = vst.msk [vmem:[#allocation3 + $0x10] sm:$0xf] %vm521, %v742
    %747 = vst.msk [vmem:[#allocation3 + $0x14] sm:$0xf] %vm521, %v743
    %v748 = vld [vmem:[#allocation2 + $0x60] sm:$0xff]
    %v749 = vld [vmem:[#allocation2 + $0x68] sm:$0xff]
    %v750 = vld [vmem:[#allocation2 + $0x70] sm:$0xff]
    %v751 = vld [vmem:[#allocation2 + $0x78] sm:$0xff]
    %v752 = vld [vmem:[#allocation2 + $0x80] sm:$0xff]
    %v753 = vld [vmem:[#allocation2 + $0x88] sm:$0xff]
    %v754 = vld [vmem:[#allocation2 + $0x90] sm:$0xff]
    %v755 = vld [vmem:[#allocation2 + $0x98] sm:$0xff]
    %v756 = vsel %vm363, %v748, %v752
    %v757 = vsel %vm364, %v749, %v753
    %v758 = vsel %vm363, %v750, %v754
    %v759 = vsel %vm364, %v751, %v755
    %v761 = vsel %vm303, %v738, 0
    %763 = vmatprep.subr.bf16.mxu0 0
    %764 = vmatpush1.bf16.msra.mxu0 0
    %765 = vmatprep.subr.bf16.mxu0 0
    %766 = vmatpush1.bf16.msra.mxu0 0
    %767 = vmatprep.subr.bf16.mxu0 0
    %768 = vmatpush1.bf16.msra.mxu0 0
    %769 = vmatprep.subr.bf16.mxu0 0
    %770 = vmatpush1.bf16.msra.mxu0 0
    %771 = vmatprep.subr.bf16.mxu0 %v408
    %772 = vmatpush1.bf16.msra.mxu0 %v407
    %773 = vmatprep.subr.bf16.mxu0 %v406
    %774 = vmatpush1.bf16.msra.mxu0 %v405
    %775 = vmatprep.subr.bf16.mxu0 %v404
    %776 = vmatpush1.bf16.msra.mxu0 %v403
    %777 = vmatprep.subr.bf16.mxu0 %v402
    %778 = vmatpush1.bf16.msra.mxu0 %v401
    %779 = vmatprep.subr.bf16.mxu0 0
    %780 = vmatpush2.bf16.msra.mxu0 0
    %781 = vmatprep.subr.bf16.mxu0 0
    %782 = vmatpush2.bf16.msra.mxu0 0
    %783 = vmatprep.subr.bf16.mxu0 0
    %784 = vmatpush2.bf16.msra.mxu0 0
    %785 = vmatprep.subr.bf16.mxu0 0
    %786 = vmatpush2.bf16.msra.mxu0 0
    %787 = vmatprep.subr.bf16.mxu0 0
    %788 = vmatpush2.bf16.msra.mxu0 0
    %789 = vmatprep.subr.bf16.mxu0 0
    %790 = vmatpush2.bf16.msra.mxu0 0
    %791 = vmatprep.subr.bf16.mxu0 0
    %792 = vmatpush2.bf16.msra.mxu0 0
    %793 = vmatprep.subr.bf16.mxu0 0
    %794 = vmatpush2.bf16.msra.mxu0 0
    %795 = vmatprep.mubr.bf16.mxu0 0
    %796 = vmatmul.mubr.bf16.gmra.mxu0 %v761
    %v797 = vpop.f32.mrf.mxu0
    %v798 = vadd.f32 0.0, %v797
    %v799 = vpop.f32.mrf.mxu0
    %v800 = vadd.f32 0.0, %v799
    %v801 = vpop.f32.mrf.mxu0
    %v802 = vadd.f32 0.0, %v801
    %v803 = vpop.f32.mrf.mxu0
    %v804 = vadd.f32 0.0, %v803
    %805 = vdwg.mxu0
    %v806 = vadd.f32 %v756, %v798
    %v807 = vadd.f32 %v758, %v802
    %v808 = vxor.u32 %v806, 2147483648
    %v809 = vxor.u32 %v807, 2147483648
    %v810 = vmul.f32 %v808, 1.442695
    %v811 = vpow.pop %v810
    %v812 = vmul.f32 %v809, 1.442695
    %v813 = vpow.pop %v812
    %v814 = vadd.f32 %v811, 1.0
    %v815 = vadd.f32 %v813, 1.0
    %v816 = vrcp.pop %v814
    %v817 = vmul.f32 1.0, %v816
    %v818 = vrcp.pop %v815
    %v819 = vmul.f32 1.0, %v818
    %v820 = vadd.f32 %v800, %v481
    %v821 = vadd.f32 %v804, %v481
    %v822 = vmul.f32 %v817, %v820
    %v823 = vmul.f32 %v819, %v821
    %v824 = vadd.f32 %v757, %v822
    %v825 = vadd.f32 %v759, %v823
    %v826 = vtanh.pop %v824
    %v827 = vtanh.pop %v825
    %v828 = vsub.f32 %v736, %v826
    %v829 = vsub.f32 %v737, %v827
    %832 = vrot.lane.b32.xlu0 %v828, 64
    %v833 = vpop.permute.xlu0 %832
    %834 = vrot.lane.b32.xlu0 %v829, 64
    %v835 = vpop.permute.xlu0 %834
    %v838 = vmul.f32 %v817, %v833
    %v839 = vmul.f32 %v819, %v835
    %842 = vrot.lane.b32.xlu0 %v838, 64
    %v843 = vpop.permute.xlu0 %842
    %844 = vrot.lane.b32.xlu0 %v839, 64
    %v845 = vpop.permute.xlu0 %844
    %v848 = vadd.f32 %v826, %v843
    %v849 = vadd.f32 %v827, %v845
    %v850 = vpack.c.bf16 %v849, %v848
    %v852 = vunpack.c.l.b16 %v850
    %v853 = vunpack.c.h.b16 %v850
    %v854 = vpack.c.b16 %v852, %v852
    %v855 = vpack.c.b16 %v853, %v853
    %858 = vst.msk [vmem:[#allocation3 + $0x18] sm:$0xf] %vm521, %v854
    %859 = vst.msk [vmem:[#allocation3 + $0x1c] sm:$0xf] %vm521, %v855
    %v860 = vld [vmem:[#allocation2 + $0x80] sm:$0xff]
    %v861 = vld [vmem:[#allocation2 + $0x88] sm:$0xff]
    %v862 = vld [vmem:[#allocation2 + $0x90] sm:$0xff]
    %v863 = vld [vmem:[#allocation2 + $0x98] sm:$0xff]
    %v864 = vld [vmem:[#allocation2 + $0x60] sm:$0xff]
    %v865 = vld [vmem:[#allocation2 + $0x68] sm:$0xff]
    %v866 = vld [vmem:[#allocation2 + $0x70] sm:$0xff]
    %v867 = vld [vmem:[#allocation2 + $0x78] sm:$0xff]
    %v868 = vsel %vm363, %v860, %v864
    %v869 = vsel %vm364, %v861, %v865
    %v870 = vsel %vm363, %v862, %v866
    %v871 = vsel %vm364, %v863, %v867
    %v873 = vsel %vm303, %v850, 0
    %875 = vmatprep.subr.bf16.mxu0 0
    %876 = vmatpush1.bf16.msra.mxu0 0
    %877 = vmatprep.subr.bf16.mxu0 0
    %878 = vmatpush1.bf16.msra.mxu0 0
    %879 = vmatprep.subr.bf16.mxu0 0
    %880 = vmatpush1.bf16.msra.mxu0 0
    %881 = vmatprep.subr.bf16.mxu0 0
    %882 = vmatpush1.bf16.msra.mxu0 0
    %883 = vmatprep.subr.bf16.mxu0 %v408
    %884 = vmatpush1.bf16.msra.mxu0 %v407
    %885 = vmatprep.subr.bf16.mxu0 %v406
    %886 = vmatpush1.bf16.msra.mxu0 %v405
    %887 = vmatprep.subr.bf16.mxu0 %v404
    %888 = vmatpush1.bf16.msra.mxu0 %v403
    %889 = vmatprep.subr.bf16.mxu0 %v402
    %890 = vmatpush1.bf16.msra.mxu0 %v401
    %891 = vmatprep.subr.bf16.mxu0 0
    %892 = vmatpush2.bf16.msra.mxu0 0
    %893 = vmatprep.subr.bf16.mxu0 0
    %894 = vmatpush2.bf16.msra.mxu0 0
    %895 = vmatprep.subr.bf16.mxu0 0
    %896 = vmatpush2.bf16.msra.mxu0 0
    %897 = vmatprep.subr.bf16.mxu0 0
    %898 = vmatpush2.bf16.msra.mxu0 0
    %899 = vmatprep.subr.bf16.mxu0 0
    %900 = vmatpush2.bf16.msra.mxu0 0
    %901 = vmatprep.subr.bf16.mxu0 0
    %902 = vmatpush2.bf16.msra.mxu0 0
    %903 = vmatprep.subr.bf16.mxu0 0
    %904 = vmatpush2.bf16.msra.mxu0 0
    %905 = vmatprep.subr.bf16.mxu0 0
    %906 = vmatpush2.bf16.msra.mxu0 0
    %907 = vmatprep.mubr.bf16.mxu0 0
    %908 = vmatmul.mubr.bf16.gmra.mxu0 %v873
    %v909 = vpop.f32.mrf.mxu0
    %v910 = vadd.f32 0.0, %v909
    %v911 = vpop.f32.mrf.mxu0
    %v912 = vadd.f32 0.0, %v911
    %v913 = vpop.f32.mrf.mxu0
    %v914 = vadd.f32 0.0, %v913
    %v915 = vpop.f32.mrf.mxu0
    %v916 = vadd.f32 0.0, %v915
    %917 = vdwg.mxu0
    %v918 = vadd.f32 %v868, %v910
    %v919 = vadd.f32 %v870, %v914
    %v920 = vxor.u32 %v918, 2147483648
    %v921 = vxor.u32 %v919, 2147483648
    %v922 = vmul.f32 %v920, 1.442695
    %v923 = vpow.pop %v922
    %v924 = vmul.f32 %v921, 1.442695
    %v925 = vpow.pop %v924
    %v926 = vadd.f32 %v923, 1.0
    %v927 = vadd.f32 %v925, 1.0
    %v928 = vrcp.pop %v926
    %v929 = vmul.f32 1.0, %v928
    %v930 = vrcp.pop %v927
    %v931 = vmul.f32 1.0, %v930
    %v932 = vadd.f32 %v912, %v481
    %v933 = vadd.f32 %v916, %v481
    %v934 = vmul.f32 %v929, %v932
    %v935 = vmul.f32 %v931, %v933
    %v936 = vadd.f32 %v869, %v934
    %v937 = vadd.f32 %v871, %v935
    %v938 = vtanh.pop %v936
    %v939 = vtanh.pop %v937
    %v940 = vsub.f32 %v848, %v938
    %v941 = vsub.f32 %v849, %v939
    %944 = vrot.lane.b32.xlu0 %v940, 64
    %v945 = vpop.permute.xlu0 %944
    %946 = vrot.lane.b32.xlu0 %v941, 64
    %v947 = vpop.permute.xlu0 %946
    %v950 = vmul.f32 %v929, %v945
    %v951 = vmul.f32 %v931, %v947
    %954 = vrot.lane.b32.xlu0 %v950, 64
    %v955 = vpop.permute.xlu0 %954
    %956 = vrot.lane.b32.xlu0 %v951, 64
    %v957 = vpop.permute.xlu0 %956
    %v960 = vadd.f32 %v938, %v955
    %v961 = vadd.f32 %v939, %v957
    %v962 = vpack.c.bf16 %v961, %v960
    %v964 = vunpack.c.l.b16 %v962
    %v965 = vunpack.c.h.b16 %v962
    %v966 = vpack.c.b16 %v964, %v964
    %v967 = vpack.c.b16 %v965, %v965
    %970 = vst.msk [vmem:[#allocation3 + $0x20] sm:$0xf] %vm521, %v966
    %971 = vst.msk [vmem:[#allocation3 + $0x24] sm:$0xf] %vm521, %v967
    %v972 = vld [vmem:[#allocation2 + $0xa0] sm:$0xff]
    %v973 = vld [vmem:[#allocation2 + $0xa8] sm:$0xff]
    %v974 = vld [vmem:[#allocation2 + $0xb0] sm:$0xff]
    %v975 = vld [vmem:[#allocation2 + $0xb8] sm:$0xff]
    %v976 = vld [vmem:[#allocation2 + $0x40] sm:$0xff]
    %v977 = vld [vmem:[#allocation2 + $0x48] sm:$0xff]
    %v978 = vld [vmem:[#allocation2 + $0x50] sm:$0xff]
    %v979 = vld [vmem:[#allocation2 + $0x58] sm:$0xff]
    %v980 = vsel %vm363, %v972, %v976
    %v981 = vsel %vm364, %v973, %v977
    %v982 = vsel %vm363, %v974, %v978
    %v983 = vsel %vm364, %v975, %v979
    %v985 = vsel %vm303, %v962, 0
    %987 = vmatprep.subr.bf16.mxu0 0
    %988 = vmatpush1.bf16.msra.mxu0 0
    %989 = vmatprep.subr.bf16.mxu0 0
    %990 = vmatpush1.bf16.msra.mxu0 0
    %991 = vmatprep.subr.bf16.mxu0 0
    %992 = vmatpush1.bf16.msra.mxu0 0
    %993 = vmatprep.subr.bf16.mxu0 0
    %994 = vmatpush1.bf16.msra.mxu0 0
    %995 = vmatprep.subr.bf16.mxu0 %v408
    %996 = vmatpush1.bf16.msra.mxu0 %v407
    %997 = vmatprep.subr.bf16.mxu0 %v406
    %998 = vmatpush1.bf16.msra.mxu0 %v405
    %999 = vmatprep.subr.bf16.mxu0 %v404
    %1000 = vmatpush1.bf16.msra.mxu0 %v403
    %1001 = vmatprep.subr.bf16.mxu0 %v402
    %1002 = vmatpush1.bf16.msra.mxu0 %v401
    %1003 = vmatprep.subr.bf16.mxu0 0
    %1004 = vmatpush2.bf16.msra.mxu0 0
    %1005 = vmatprep.subr.bf16.mxu0 0
    %1006 = vmatpush2.bf16.msra.mxu0 0
    %1007 = vmatprep.subr.bf16.mxu0 0
    %1008 = vmatpush2.bf16.msra.mxu0 0
    %1009 = vmatprep.subr.bf16.mxu0 0
    %1010 = vmatpush2.bf16.msra.mxu0 0
    %1011 = vmatprep.subr.bf16.mxu0 0
    %1012 = vmatpush2.bf16.msra.mxu0 0
    %1013 = vmatprep.subr.bf16.mxu0 0
    %1014 = vmatpush2.bf16.msra.mxu0 0
    %1015 = vmatprep.subr.bf16.mxu0 0
    %1016 = vmatpush2.bf16.msra.mxu0 0
    %1017 = vmatprep.subr.bf16.mxu0 0
    %1018 = vmatpush2.bf16.msra.mxu0 0
    %1019 = vmatprep.mubr.bf16.mxu0 0
    %1020 = vmatmul.mubr.bf16.gmra.mxu0 %v985
    %v1021 = vpop.f32.mrf.mxu0
    %v1022 = vadd.f32 0.0, %v1021
    %v1023 = vpop.f32.mrf.mxu0
    %v1024 = vadd.f32 0.0, %v1023
    %v1025 = vpop.f32.mrf.mxu0
    %v1026 = vadd.f32 0.0, %v1025
    %v1027 = vpop.f32.mrf.mxu0
    %v1028 = vadd.f32 0.0, %v1027
    %1029 = vdwg.mxu0
    %v1030 = vadd.f32 %v980, %v1022
    %v1031 = vadd.f32 %v982, %v1026
    %v1032 = vxor.u32 %v1030, 2147483648
    %v1033 = vxor.u32 %v1031, 2147483648
    %v1034 = vmul.f32 %v1032, 1.442695
    %v1035 = vpow.pop %v1034
    %v1036 = vmul.f32 %v1033, 1.442695
    %v1037 = vpow.pop %v1036
    %v1038 = vadd.f32 %v1035, 1.0
    %v1039 = vadd.f32 %v1037, 1.0
    %v1040 = vrcp.pop %v1038
    %v1041 = vmul.f32 1.0, %v1040
    %v1042 = vrcp.pop %v1039
    %v1043 = vmul.f32 1.0, %v1042
    %v1044 = vadd.f32 %v1024, %v481
    %v1045 = vadd.f32 %v1028, %v481
    %v1046 = vmul.f32 %v1041, %v1044
    %v1047 = vmul.f32 %v1043, %v1045
    %v1048 = vadd.f32 %v981, %v1046
    %v1049 = vadd.f32 %v983, %v1047
    %v1050 = vtanh.pop %v1048
    %v1051 = vtanh.pop %v1049
    %v1052 = vsub.f32 %v960, %v1050
    %v1053 = vsub.f32 %v961, %v1051
    %1056 = vrot.lane.b32.xlu0 %v1052, 64
    %v1057 = vpop.permute.xlu0 %1056
    %1058 = vrot.lane.b32.xlu0 %v1053, 64
    %v1059 = vpop.permute.xlu0 %1058
    %v1062 = vmul.f32 %v1041, %v1057
    %v1063 = vmul.f32 %v1043, %v1059
    %1066 = vrot.lane.b32.xlu0 %v1062, 64
    %v1067 = vpop.permute.xlu0 %1066
    %1068 = vrot.lane.b32.xlu0 %v1063, 64
    %v1069 = vpop.permute.xlu0 %1068
    %v1072 = vadd.f32 %v1050, %v1067
    %v1073 = vadd.f32 %v1051, %v1069
    %v1074 = vpack.c.bf16 %v1073, %v1072
    %v1076 = vunpack.c.l.b16 %v1074
    %v1077 = vunpack.c.h.b16 %v1074
    %v1078 = vpack.c.b16 %v1076, %v1076
    %v1079 = vpack.c.b16 %v1077, %v1077
    %1082 = vst.msk [vmem:[#allocation3 + $0x28] sm:$0xf] %vm521, %v1078
    %1083 = vst.msk [vmem:[#allocation3 + $0x2c] sm:$0xf] %vm521, %v1079
    %v1084 = vld [vmem:[#allocation2 + $0xc0] sm:$0xff]
    %v1085 = vld [vmem:[#allocation2 + $0xc8] sm:$0xff]
    %v1086 = vld [vmem:[#allocation2 + $0xd0] sm:$0xff]
    %v1087 = vld [vmem:[#allocation2 + $0xd8] sm:$0xff]
    %v1088 = vld [vmem:[#allocation2 + $0x20] sm:$0xff]
    %v1089 = vld [vmem:[#allocation2 + $0x28] sm:$0xff]
    %v1090 = vld [vmem:[#allocation2 + $0x30] sm:$0xff]
    %v1091 = vld [vmem:[#allocation2 + $0x38] sm:$0xff]
    %v1092 = vsel %vm363, %v1084, %v1088
    %v1093 = vsel %vm364, %v1085, %v1089
    %v1094 = vsel %vm363, %v1086, %v1090
    %v1095 = vsel %vm364, %v1087, %v1091
    %v1097 = vsel %vm303, %v1074, 0
    %1099 = vmatprep.subr.bf16.mxu0 0
    %1100 = vmatpush1.bf16.msra.mxu0 0
    %1101 = vmatprep.subr.bf16.mxu0 0
    %1102 = vmatpush1.bf16.msra.mxu0 0
    %1103 = vmatprep.subr.bf16.mxu0 0
    %1104 = vmatpush1.bf16.msra.mxu0 0
    %1105 = vmatprep.subr.bf16.mxu0 0
    %1106 = vmatpush1.bf16.msra.mxu0 0
    %1107 = vmatprep.subr.bf16.mxu0 %v408
    %1108 = vmatpush1.bf16.msra.mxu0 %v407
    %1109 = vmatprep.subr.bf16.mxu0 %v406
    %1110 = vmatpush1.bf16.msra.mxu0 %v405
    %1111 = vmatprep.subr.bf16.mxu0 %v404
    %1112 = vmatpush1.bf16.msra.mxu0 %v403
    %1113 = vmatprep.subr.bf16.mxu0 %v402
    %1114 = vmatpush1.bf16.msra.mxu0 %v401
    %1115 = vmatprep.subr.bf16.mxu0 0
    %1116 = vmatpush2.bf16.msra.mxu0 0
    %1117 = vmatprep.subr.bf16.mxu0 0
    %1118 = vmatpush2.bf16.msra.mxu0 0
    %1119 = vmatprep.subr.bf16.mxu0 0
    %1120 = vmatpush2.bf16.msra.mxu0 0
    %1121 = vmatprep.subr.bf16.mxu0 0
    %1122 = vmatpush2.bf16.msra.mxu0 0
    %1123 = vmatprep.subr.bf16.mxu0 0
    %1124 = vmatpush2.bf16.msra.mxu0 0
    %1125 = vmatprep.subr.bf16.mxu0 0
    %1126 = vmatpush2.bf16.msra.mxu0 0
    %1127 = vmatprep.subr.bf16.mxu0 0
    %1128 = vmatpush2.bf16.msra.mxu0 0
    %1129 = vmatprep.subr.bf16.mxu0 0
    %1130 = vmatpush2.bf16.msra.mxu0 0
    %1131 = vmatprep.mubr.bf16.mxu0 0
    %1132 = vmatmul.mubr.bf16.gmra.mxu0 %v1097
    %v1133 = vpop.f32.mrf.mxu0
    %v1134 = vadd.f32 0.0, %v1133
    %v1135 = vpop.f32.mrf.mxu0
    %v1136 = vadd.f32 0.0, %v1135
    %v1137 = vpop.f32.mrf.mxu0
    %v1138 = vadd.f32 0.0, %v1137
    %v1139 = vpop.f32.mrf.mxu0
    %v1140 = vadd.f32 0.0, %v1139
    %1141 = vdwg.mxu0
    %v1142 = vadd.f32 %v1092, %v1134
    %v1143 = vadd.f32 %v1094, %v1138
    %v1144 = vxor.u32 %v1142, 2147483648
    %v1145 = vxor.u32 %v1143, 2147483648
    %v1146 = vmul.f32 %v1144, 1.442695
    %v1147 = vpow.pop %v1146
    %v1148 = vmul.f32 %v1145, 1.442695
    %v1149 = vpow.pop %v1148
    %v1150 = vadd.f32 %v1147, 1.0
    %v1151 = vadd.f32 %v1149, 1.0
    %v1152 = vrcp.pop %v1150
    %v1153 = vmul.f32 1.0, %v1152
    %v1154 = vrcp.pop %v1151
    %v1155 = vmul.f32 1.0, %v1154
    %v1156 = vadd.f32 %v1136, %v481
    %v1157 = vadd.f32 %v1140, %v481
    %v1158 = vmul.f32 %v1153, %v1156
    %v1159 = vmul.f32 %v1155, %v1157
    %v1160 = vadd.f32 %v1093, %v1158
    %v1161 = vadd.f32 %v1095, %v1159
    %v1162 = vtanh.pop %v1160
    %v1163 = vtanh.pop %v1161
    %v1164 = vsub.f32 %v1072, %v1162
    %v1165 = vsub.f32 %v1073, %v1163
    %1168 = vrot.lane.b32.xlu0 %v1164, 64
    %v1169 = vpop.permute.xlu0 %1168
    %1170 = vrot.lane.b32.xlu0 %v1165, 64
    %v1171 = vpop.permute.xlu0 %1170
    %v1174 = vmul.f32 %v1153, %v1169
    %v1175 = vmul.f32 %v1155, %v1171
    %1178 = vrot.lane.b32.xlu0 %v1174, 64
    %v1179 = vpop.permute.xlu0 %1178
    %1180 = vrot.lane.b32.xlu0 %v1175, 64
    %v1181 = vpop.permute.xlu0 %1180
    %v1184 = vadd.f32 %v1162, %v1179
    %v1185 = vadd.f32 %v1163, %v1181
    %v1186 = vpack.c.bf16 %v1185, %v1184
    %v1188 = vunpack.c.l.b16 %v1186
    %v1189 = vunpack.c.h.b16 %v1186
    %v1190 = vpack.c.b16 %v1188, %v1188
    %v1191 = vpack.c.b16 %v1189, %v1189
    %1194 = vst.msk [vmem:[#allocation3 + $0x30] sm:$0xf] %vm521, %v1190
    %1195 = vst.msk [vmem:[#allocation3 + $0x34] sm:$0xf] %vm521, %v1191
    %v1196 = vld [vmem:[#allocation2 + $0xe0] sm:$0xff]
    %v1197 = vld [vmem:[#allocation2 + $0xe8] sm:$0xff]
    %v1198 = vld [vmem:[#allocation2 + $0xf0] sm:$0xff]
    %v1199 = vld [vmem:[#allocation2 + $0xf8] sm:$0xff]
    %v1200 = vld [vmem:[#allocation2] sm:$0xff]
    %v1201 = vld [vmem:[#allocation2 + $0x8] sm:$0xff]
    %v1202 = vld [vmem:[#allocation2 + $0x10] sm:$0xff]
    %v1203 = vld [vmem:[#allocation2 + $0x18] sm:$0xff]
    %v1204 = vsel %vm363, %v1196, %v1200
    %v1205 = vsel %vm364, %v1197, %v1201
    %v1206 = vsel %vm363, %v1198, %v1202
    %v1207 = vsel %vm364, %v1199, %v1203
    %v1209 = vsel %vm303, %v1186, 0
    %1211 = vmatprep.subr.bf16.mxu0 0
    %1212 = vmatpush1.bf16.msra.mxu0 0
    %1213 = vmatprep.subr.bf16.mxu0 0
    %1214 = vmatpush1.bf16.msra.mxu0 0
    %1215 = vmatprep.subr.bf16.mxu0 0
    %1216 = vmatpush1.bf16.msra.mxu0 0
    %1217 = vmatprep.subr.bf16.mxu0 0
    %1218 = vmatpush1.bf16.msra.mxu0 0
    %1219 = vmatprep.subr.bf16.mxu0 %v408
    %1220 = vmatpush1.bf16.msra.mxu0 %v407
    %1221 = vmatprep.subr.bf16.mxu0 %v406
    %1222 = vmatpush1.bf16.msra.mxu0 %v405
    %1223 = vmatprep.subr.bf16.mxu0 %v404
    %1224 = vmatpush1.bf16.msra.mxu0 %v403
    %1225 = vmatprep.subr.bf16.mxu0 %v402
    %1226 = vmatpush1.bf16.msra.mxu0 %v401
    %1227 = vmatprep.subr.bf16.mxu0 0
    %1228 = vmatpush2.bf16.msra.mxu0 0
    %1229 = vmatprep.subr.bf16.mxu0 0
    %1230 = vmatpush2.bf16.msra.mxu0 0
    %1231 = vmatprep.subr.bf16.mxu0 0
    %1232 = vmatpush2.bf16.msra.mxu0 0
    %1233 = vmatprep.subr.bf16.mxu0 0
    %1234 = vmatpush2.bf16.msra.mxu0 0
    %1235 = vmatprep.subr.bf16.mxu0 0
    %1236 = vmatpush2.bf16.msra.mxu0 0
    %1237 = vmatprep.subr.bf16.mxu0 0
    %1238 = vmatpush2.bf16.msra.mxu0 0
    %1239 = vmatprep.subr.bf16.mxu0 0
    %1240 = vmatpush2.bf16.msra.mxu0 0
    %1241 = vmatprep.subr.bf16.mxu0 0
    %1242 = vmatpush2.bf16.msra.mxu0 0
    %1243 = vmatprep.mubr.bf16.mxu0 0
    %1244 = vmatmul.mubr.bf16.gmra.mxu0 %v1209
    %v1245 = vpop.f32.mrf.mxu0
    %v1246 = vadd.f32 0.0, %v1245
    %v1247 = vpop.f32.mrf.mxu0
    %v1248 = vadd.f32 0.0, %v1247
    %v1249 = vpop.f32.mrf.mxu0
    %v1250 = vadd.f32 0.0, %v1249
    %v1251 = vpop.f32.mrf.mxu0
    %v1252 = vadd.f32 0.0, %v1251
    %1253 = vdwg.mxu0
    %v1254 = vadd.f32 %v1204, %v1246
    %v1255 = vadd.f32 %v1206, %v1250
    %v1256 = vxor.u32 %v1254, 2147483648
    %v1257 = vxor.u32 %v1255, 2147483648
    %v1258 = vmul.f32 %v1256, 1.442695
    %v1259 = vpow.pop %v1258
    %v1260 = vmul.f32 %v1257, 1.442695
    %v1261 = vpow.pop %v1260
    %v1262 = vadd.f32 %v1259, 1.0
    %v1263 = vadd.f32 %v1261, 1.0
    %v1264 = vrcp.pop %v1262
    %v1265 = vmul.f32 1.0, %v1264
    %v1266 = vrcp.pop %v1263
    %v1267 = vmul.f32 1.0, %v1266
    %v1268 = vadd.f32 %v1248, %v481
    %v1269 = vadd.f32 %v1252, %v481
    %v1270 = vmul.f32 %v1265, %v1268
    %v1271 = vmul.f32 %v1267, %v1269
    %v1272 = vadd.f32 %v1205, %v1270
    %v1273 = vadd.f32 %v1207, %v1271
    %v1274 = vtanh.pop %v1272
    %v1275 = vtanh.pop %v1273
    %v1276 = vsub.f32 %v1184, %v1274
    %v1277 = vsub.f32 %v1185, %v1275
    %1280 = vrot.lane.b32.xlu0 %v1276, 64
    %v1281 = vpop.permute.xlu0 %1280
    %1282 = vrot.lane.b32.xlu0 %v1277, 64
    %v1283 = vpop.permute.xlu0 %1282
    %v1286 = vmul.f32 %v1265, %v1281
    %v1287 = vmul.f32 %v1267, %v1283
    %1290 = vrot.lane.b32.xlu0 %v1286, 64
    %v1291 = vpop.permute.xlu0 %1290
    %1292 = vrot.lane.b32.xlu0 %v1287, 64
    %v1293 = vpop.permute.xlu0 %1292
    %v1296 = vadd.f32 %v1274, %v1291
    %v1297 = vadd.f32 %v1275, %v1293
    %v1298 = vpack.c.bf16 %v1297, %v1296
    %v1300 = vunpack.c.l.b16 %v1298
    %v1301 = vunpack.c.h.b16 %v1298
    %v1302 = vpack.c.b16 %v1300, %v1300
    %v1303 = vpack.c.b16 %v1301, %v1301
    %1306 = vst.msk [vmem:[#allocation3 + $0x38] sm:$0xf] %vm521, %v1302
    %1307 = vst.msk [vmem:[#allocation3 + $0x3c] sm:$0xf] %vm521, %v1303
    %v1308 = vld [vmem:[#allocation3] sm:$0xf]
    %v1309 = vld [vmem:[#allocation3 + $0x4] sm:$0xf]
    %v1310 = vld [vmem:[#allocation3 + $0x8] sm:$0xf]
    %v1311 = vld [vmem:[#allocation3 + $0xc] sm:$0xf]
    %v1312 = vld [vmem:[#allocation3 + $0x10] sm:$0xf]
    %v1313 = vld [vmem:[#allocation3 + $0x14] sm:$0xf]
    %v1314 = vld [vmem:[#allocation3 + $0x18] sm:$0xf]
    %v1315 = vld [vmem:[#allocation3 + $0x1c] sm:$0xf]
    %v1316 = vld [vmem:[#allocation3 + $0x20] sm:$0xf]
    %v1317 = vld [vmem:[#allocation3 + $0x24] sm:$0xf]
    %v1318 = vld [vmem:[#allocation3 + $0x28] sm:$0xf]
    %v1319 = vld [vmem:[#allocation3 + $0x2c] sm:$0xf]
    %v1320 = vld [vmem:[#allocation3 + $0x30] sm:$0xf]
    %v1321 = vld [vmem:[#allocation3 + $0x34] sm:$0xf]
    %v1322 = vld [vmem:[#allocation3 + $0x38] sm:$0xf]
    %v1323 = vld [vmem:[#allocation3 + $0x3c] sm:$0xf]
    %v1324 = vld [vmem:[%s5] sm:$0xff]
    %v1325 = vld [vmem:[%s5 + $0x8] sm:$0xff]
    %v1326 = vld [vmem:[%s5 + $0x10] sm:$0xff]
    %v1327 = vld [vmem:[%s5 + $0x18] sm:$0xff]
    %v1328 = vld [vmem:[%s5 + $0x20] sm:$0xff]
    %v1329 = vld [vmem:[%s5 + $0x28] sm:$0xff]
    %v1330 = vld [vmem:[%s5 + $0x30] sm:$0xff]
    %v1331 = vld [vmem:[%s5 + $0x38] sm:$0xff]
    %v1348 = vunpack.c.l.b16 %v1308
    %v1349 = vunpack.c.l.b16 %v1309
    %v1350 = vunpack.c.l.b16 %v1310
    %v1351 = vunpack.c.l.b16 %v1311
    %v1352 = vunpack.c.l.b16 %v1312
    %v1353 = vunpack.c.l.b16 %v1313
    %v1354 = vunpack.c.l.b16 %v1314
    %v1355 = vunpack.c.l.b16 %v1315
    %v1356 = vunpack.c.l.b16 %v1316
    %v1357 = vunpack.c.l.b16 %v1317
    %v1358 = vunpack.c.l.b16 %v1318
    %v1359 = vunpack.c.l.b16 %v1319
    %v1360 = vunpack.c.l.b16 %v1320
    %v1361 = vunpack.c.l.b16 %v1321
    %v1362 = vunpack.c.l.b16 %v1322
    %v1363 = vunpack.c.l.b16 %v1323
    %v1364 = vpack.c.b16 %v1349, %v1348
    %v1365 = vpack.c.b16 %v1351, %v1350
    %v1366 = vpack.c.b16 %v1353, %v1352
    %v1367 = vpack.c.b16 %v1355, %v1354
    %v1368 = vpack.c.b16 %v1357, %v1356
    %v1369 = vpack.c.b16 %v1359, %v1358
    %v1370 = vpack.c.b16 %v1361, %v1360
    %v1371 = vpack.c.b16 %v1363, %v1362
    %v1380 = vunpack.c.l.b16 %v1324
    %v1381 = vunpack.c.h.b16 %v1324
    %v1382 = vunpack.c.l.b16 %v1325
    %v1383 = vunpack.c.h.b16 %v1325
    %v1384 = vunpack.c.l.b16 %v1326
    %v1385 = vunpack.c.h.b16 %v1326
    %v1386 = vunpack.c.l.b16 %v1327
    %v1387 = vunpack.c.h.b16 %v1327
    %v1388 = vunpack.c.l.b16 %v1328
    %v1389 = vunpack.c.h.b16 %v1328
    %v1390 = vunpack.c.l.b16 %v1329
    %v1391 = vunpack.c.h.b16 %v1329
    %v1392 = vunpack.c.l.b16 %v1330
    %v1393 = vunpack.c.h.b16 %v1330
    %v1394 = vunpack.c.l.b16 %v1331
    %v1395 = vunpack.c.h.b16 %v1331
    %v1396 = vpack.c.b16 %v1382, %v1380
    %v1397 = vpack.c.b16 %v1383, %v1381
    %v1398 = vpack.c.b16 %v1386, %v1384
    %v1399 = vpack.c.b16 %v1387, %v1385
    %v1400 = vpack.c.b16 %v1390, %v1388
    %v1401 = vpack.c.b16 %v1391, %v1389
    %v1402 = vpack.c.b16 %v1394, %v1392
    %v1403 = vpack.c.b16 %v1395, %v1393
    %v1413 = vsel %vm303, %v1364, 0
    %v1416 = vsel %vm303, %v1365, 0
    %v1419 = vsel %vm303, %v1366, 0
    %v1422 = vsel %vm303, %v1367, 0
    %v1425 = vsel %vm303, %v1368, 0
    %v1428 = vsel %vm303, %v1369, 0
    %v1431 = vsel %vm303, %v1370, 0
    %v1434 = vsel %vm303, %v1371, 0
    %1436 = vmatprep.subr.bf16.mxu0 0
    %1437 = vmatpush1.bf16.msra.mxu0 0
    %1438 = vmatprep.subr.bf16.mxu0 0
    %1439 = vmatpush1.bf16.msra.mxu0 0
    %1440 = vmatprep.subr.bf16.mxu0 0
    %1441 = vmatpush1.bf16.msra.mxu0 0
    %1442 = vmatprep.subr.bf16.mxu0 0
    %1443 = vmatpush1.bf16.msra.mxu0 0
    %1444 = vmatprep.subr.bf16.mxu0 %v1403
    %1445 = vmatpush1.bf16.msra.mxu0 %v1402
    %1446 = vmatprep.subr.bf16.mxu0 %v1401
    %1447 = vmatpush1.bf16.msra.mxu0 %v1400
    %1448 = vmatprep.subr.bf16.mxu0 %v1399
    %1449 = vmatpush1.bf16.msra.mxu0 %v1398
    %1450 = vmatprep.subr.bf16.mxu0 %v1397
    %1451 = vmatpush1.bf16.msra.mxu0 %v1396
    %1452 = vmatprep.subr.bf16.mxu0 0
    %1453 = vmatpush2.bf16.msra.mxu0 0
    %1454 = vmatprep.subr.bf16.mxu0 0
    %1455 = vmatpush2.bf16.msra.mxu0 0
    %1456 = vmatprep.subr.bf16.mxu0 0
    %1457 = vmatpush2.bf16.msra.mxu0 0
    %1458 = vmatprep.subr.bf16.mxu0 0
    %1459 = vmatpush2.bf16.msra.mxu0 0
    %1460 = vmatprep.subr.bf16.mxu0 0
    %1461 = vmatpush2.bf16.msra.mxu0 0
    %1462 = vmatprep.subr.bf16.mxu0 0
    %1463 = vmatpush2.bf16.msra.mxu0 0
    %1464 = vmatprep.subr.bf16.mxu0 0
    %1465 = vmatpush2.bf16.msra.mxu0 0
    %1466 = vmatprep.subr.bf16.mxu0 0
    %1467 = vmatpush2.bf16.msra.mxu0 0
    %1468 = vmatprep.mubr.bf16.mxu0 0
    %1469 = vmatmul.mubr.bf16.gmra.mxu0 %v1413
    %v1470 = vpop.f32.mrf.mxu0
    %v1471 = vadd.f32 0.0, %v1470
    %v1472 = vpop.f32.mrf.mxu0
    %v1473 = vadd.f32 0.0, %v1472
    %v1474 = vpop.f32.mrf.mxu0
    %v1475 = vadd.f32 0.0, %v1474
    %v1476 = vpop.f32.mrf.mxu0
    %v1477 = vadd.f32 0.0, %v1476
    %1478 = vmatprep.mubr.bf16.mxu0 0
    %1479 = vmatmul.mubr.bf16.gmra.mxu0 %v1416
    %v1480 = vpop.f32.mrf.mxu0
    %v1481 = vadd.f32 0.0, %v1480
    %v1482 = vpop.f32.mrf.mxu0
    %v1483 = vadd.f32 0.0, %v1482
    %v1484 = vpop.f32.mrf.mxu0
    %v1485 = vadd.f32 0.0, %v1484
    %v1486 = vpop.f32.mrf.mxu0
    %v1487 = vadd.f32 0.0, %v1486
    %1488 = vmatprep.mubr.bf16.mxu0 0
    %1489 = vmatmul.mubr.bf16.gmra.mxu0 %v1419
    %v1490 = vpop.f32.mrf.mxu0
    %v1491 = vadd.f32 0.0, %v1490
    %v1492 = vpop.f32.mrf.mxu0
    %v1493 = vadd.f32 0.0, %v1492
    %v1494 = vpop.f32.mrf.mxu0
    %v1495 = vadd.f32 0.0, %v1494
    %v1496 = vpop.f32.mrf.mxu0
    %v1497 = vadd.f32 0.0, %v1496
    %1498 = vmatprep.mubr.bf16.mxu0 0
    %1499 = vmatmul.mubr.bf16.gmra.mxu0 %v1422
    %v1500 = vpop.f32.mrf.mxu0
    %v1501 = vadd.f32 0.0, %v1500
    %v1502 = vpop.f32.mrf.mxu0
    %v1503 = vadd.f32 0.0, %v1502
    %v1504 = vpop.f32.mrf.mxu0
    %v1505 = vadd.f32 0.0, %v1504
    %v1506 = vpop.f32.mrf.mxu0
    %v1507 = vadd.f32 0.0, %v1506
    %1508 = vmatprep.mubr.bf16.mxu0 0
    %1509 = vmatmul.mubr.bf16.gmra.mxu0 %v1425
    %v1510 = vpop.f32.mrf.mxu0
    %v1511 = vadd.f32 0.0, %v1510
    %v1512 = vpop.f32.mrf.mxu0
    %v1513 = vadd.f32 0.0, %v1512
    %v1514 = vpop.f32.mrf.mxu0
    %v1515 = vadd.f32 0.0, %v1514
    %v1516 = vpop.f32.mrf.mxu0
    %v1517 = vadd.f32 0.0, %v1516
    %1518 = vmatprep.mubr.bf16.mxu0 0
    %1519 = vmatmul.mubr.bf16.gmra.mxu0 %v1428
    %v1520 = vpop.f32.mrf.mxu0
    %v1521 = vadd.f32 0.0, %v1520
    %v1522 = vpop.f32.mrf.mxu0
    %v1523 = vadd.f32 0.0, %v1522
    %v1524 = vpop.f32.mrf.mxu0
    %v1525 = vadd.f32 0.0, %v1524
    %v1526 = vpop.f32.mrf.mxu0
    %v1527 = vadd.f32 0.0, %v1526
    %1528 = vmatprep.mubr.bf16.mxu0 0
    %1529 = vmatmul.mubr.bf16.gmra.mxu0 %v1431
    %v1530 = vpop.f32.mrf.mxu0
    %v1531 = vadd.f32 0.0, %v1530
    %v1532 = vpop.f32.mrf.mxu0
    %v1533 = vadd.f32 0.0, %v1532
    %v1534 = vpop.f32.mrf.mxu0
    %v1535 = vadd.f32 0.0, %v1534
    %v1536 = vpop.f32.mrf.mxu0
    %v1537 = vadd.f32 0.0, %v1536
    %1538 = vmatprep.mubr.bf16.mxu0 0
    %1539 = vmatmul.mubr.bf16.gmra.mxu0 %v1434
    %v1540 = vpop.f32.mrf.mxu0
    %v1541 = vadd.f32 0.0, %v1540
    %v1542 = vpop.f32.mrf.mxu0
    %v1543 = vadd.f32 0.0, %v1542
    %v1544 = vpop.f32.mrf.mxu0
    %v1545 = vadd.f32 0.0, %v1544
    %v1546 = vpop.f32.mrf.mxu0
    %v1547 = vadd.f32 0.0, %v1546
    %1548 = vdwg.mxu0
    %v1549 = vld [vmem:[%s6] sm:$0x1]
    %v1550 = vadd.f32 %v1471, %v1543
    %v1551 = vadd.f32 %v1475, %v1547
    %v1553 = vlaneseq
    %v1554 = vshrl.u32 %v1553, 7
    %v1555 = vsub.s32 0, %v1554
    %v1556 = vrot.slane %v1549, %v1555
    %v1558 = vadd.f32 %v1550, %v1556
    %v1559 = vadd.f32 %v1551, %v1556
    %v1560 = vmax.f32 %v1558, 0.0
    %v1561 = vmax.f32 %v1559, 0.0
    %v1562 = vadd.f32 %v1481, %v1533
    %v1563 = vadd.f32 %v1485, %v1537
    %v1564 = vadd.f32 %v1562, %v1556
    %v1565 = vadd.f32 %v1563, %v1556
    %v1566 = vmax.f32 %v1564, 0.0
    %v1567 = vmax.f32 %v1565, 0.0
    %v1568 = vmax.f32 %v1560, %v1566
    %v1569 = vmax.f32 %v1561, %v1567
    %v1570 = vadd.f32 %v1491, %v1523
    %v1571 = vadd.f32 %v1495, %v1527
    %v1572 = vadd.f32 %v1570, %v1556
    %v1573 = vadd.f32 %v1571, %v1556
    %v1574 = vmax.f32 %v1572, 0.0
    %v1575 = vmax.f32 %v1573, 0.0
    %v1576 = vmax.f32 %v1568, %v1574
    %v1577 = vmax.f32 %v1569, %v1575
    %v1578 = vadd.f32 %v1501, %v1513
    %v1579 = vadd.f32 %v1505, %v1517
    %v1580 = vadd.f32 %v1578, %v1556
    %v1581 = vadd.f32 %v1579, %v1556
    %v1582 = vmax.f32 %v1580, 0.0
    %v1583 = vmax.f32 %v1581, 0.0
    %v1584 = vmax.f32 %v1576, %v1582
    %v1585 = vmax.f32 %v1577, %v1583
    %v1586 = vadd.f32 %v1511, %v1503
    %v1587 = vadd.f32 %v1515, %v1507
    %v1588 = vadd.f32 %v1586, %v1556
    %v1589 = vadd.f32 %v1587, %v1556
    %v1590 = vmax.f32 %v1588, 0.0
    %v1591 = vmax.f32 %v1589, 0.0
    %v1592 = vmax.f32 %v1584, %v1590
    %v1593 = vmax.f32 %v1585, %v1591
    %v1594 = vadd.f32 %v1521, %v1493
    %v1595 = vadd.f32 %v1525, %v1497
    %v1596 = vadd.f32 %v1594, %v1556
    %v1597 = vadd.f32 %v1595, %v1556
    %v1598 = vmax.f32 %v1596, 0.0
    %v1599 = vmax.f32 %v1597, 0.0
    %v1600 = vmax.f32 %v1592, %v1598
    %v1601 = vmax.f32 %v1593, %v1599
    %v1602 = vadd.f32 %v1531, %v1483
    %v1603 = vadd.f32 %v1535, %v1487
    %v1604 = vadd.f32 %v1602, %v1556
    %v1605 = vadd.f32 %v1603, %v1556
    %v1606 = vmax.f32 %v1604, 0.0
    %v1607 = vmax.f32 %v1605, 0.0
    %v1608 = vmax.f32 %v1600, %v1606
    %v1609 = vmax.f32 %v1601, %v1607
    %v1610 = vadd.f32 %v1541, %v1473
    %v1611 = vadd.f32 %v1545, %v1477
    %v1612 = vadd.f32 %v1610, %v1556
    %v1613 = vadd.f32 %v1611, %v1556
    %v1614 = vmax.f32 %v1612, 0.0
    %v1615 = vmax.f32 %v1613, 0.0
    %v1616 = vmax.f32 %v1608, %v1614
    %v1617 = vmax.f32 %v1609, %v1615
    %v1618 = vld [vmem:[#allocation7] sm:$0xf]
    %v1619 = vld [vmem:[#allocation7 + $0x4] sm:$0xf]
    %v1620 = vld [vmem:[#allocation7 + $0x8] sm:$0xf]
    %v1621 = vld [vmem:[#allocation7 + $0xc] sm:$0xf]
    %v1622 = vld [vmem:[#allocation7 + $0x10] sm:$0xf]
    %v1623 = vld [vmem:[#allocation7 + $0x14] sm:$0xf]
    %v1624 = vld [vmem:[#allocation7 + $0x18] sm:$0xf]
    %v1625 = vld [vmem:[#allocation7 + $0x1c] sm:$0xf]
    %v1626 = vpack.c.bf16 %v1617, %v1616
    %v1627 = vld [vmem:[%s8] sm:$0xf]
    %v1628 = vld [vmem:[%s8 + $0x4] sm:$0xf]
    %v1629 = vld [vmem:[%s8 + $0x8] sm:$0xf]
    %v1630 = vld [vmem:[%s8 + $0xc] sm:$0xf]
    %v1631 = vld [vmem:[%s8 + $0x10] sm:$0xf]
    %v1632 = vld [vmem:[%s8 + $0x14] sm:$0xf]
    %v1633 = vld [vmem:[%s8 + $0x18] sm:$0xf]
    %v1634 = vld [vmem:[%s8 + $0x1c] sm:$0xf]
    %v1635 = vld [vmem:[%s8 + $0x20] sm:$0xf]
    %v1636 = vld [vmem:[%s8 + $0x24] sm:$0xf]
    %v1637 = vld [vmem:[%s8 + $0x28] sm:$0xf]
    %v1638 = vld [vmem:[%s8 + $0x2c] sm:$0xf]
    %v1639 = vld [vmem:[%s8 + $0x30] sm:$0xf]
    %v1640 = vld [vmem:[%s8 + $0x34] sm:$0xf]
    %v1641 = vld [vmem:[%s8 + $0x38] sm:$0xf]
    %v1642 = vld [vmem:[%s8 + $0x3c] sm:$0xf]
    %v1659 = vunpack.c.l.b16 %v1627
    %v1660 = vunpack.c.l.b16 %v1628
    %v1661 = vunpack.c.l.b16 %v1629
    %v1662 = vunpack.c.l.b16 %v1630
    %v1663 = vunpack.c.l.b16 %v1631
    %v1664 = vunpack.c.l.b16 %v1632
    %v1665 = vunpack.c.l.b16 %v1633
    %v1666 = vunpack.c.l.b16 %v1634
    %v1667 = vunpack.c.l.b16 %v1635
    %v1668 = vunpack.c.l.b16 %v1636
    %v1669 = vunpack.c.l.b16 %v1637
    %v1670 = vunpack.c.l.b16 %v1638
    %v1671 = vunpack.c.l.b16 %v1639
    %v1672 = vunpack.c.l.b16 %v1640
    %v1673 = vunpack.c.l.b16 %v1641
    %v1674 = vunpack.c.l.b16 %v1642
    %v1675 = vpack.c.b16 %v1660, %v1659
    %v1676 = vpack.c.b16 %v1662, %v1661
    %v1677 = vpack.c.b16 %v1664, %v1663
    %v1678 = vpack.c.b16 %v1666, %v1665
    %v1679 = vpack.c.b16 %v1668, %v1667
    %v1680 = vpack.c.b16 %v1670, %v1669
    %v1681 = vpack.c.b16 %v1672, %v1671
    %v1682 = vpack.c.b16 %v1674, %v1673
    %1691 = vmatprep.subr.bf16.mxu0 0
    %1692 = vmatpush1.bf16.msra.mxu0 %v1682
    %1693 = vmatprep.subr.bf16.mxu0 0
    %1694 = vmatpush1.bf16.msra.mxu0 %v1681
    %1695 = vmatprep.subr.bf16.mxu0 0
    %1696 = vmatpush1.bf16.msra.mxu0 %v1680
    %1697 = vmatprep.subr.bf16.mxu0 0
    %1698 = vmatpush1.bf16.msra.mxu0 %v1679
    %1699 = vmatprep.subr.bf16.mxu0 0
    %1700 = vmatpush1.bf16.msra.mxu0 %v1678
    %1701 = vmatprep.subr.bf16.mxu0 0
    %1702 = vmatpush1.bf16.msra.mxu0 %v1677
    %1703 = vmatprep.subr.bf16.mxu0 0
    %1704 = vmatpush1.bf16.msra.mxu0 %v1676
    %1705 = vmatprep.subr.bf16.mxu0 0
    %1706 = vmatpush1.bf16.msra.mxu0 %v1675
    %1707 = vmatprep.subr.bf16.mxu0 0
    %1708 = vmatpush2.bf16.msra.mxu0 0
    %1709 = vmatprep.subr.bf16.mxu0 0
    %1710 = vmatpush2.bf16.msra.mxu0 0
    %1711 = vmatprep.subr.bf16.mxu0 0
    %1712 = vmatpush2.bf16.msra.mxu0 0
    %1713 = vmatprep.subr.bf16.mxu0 0
    %1714 = vmatpush2.bf16.msra.mxu0 0
    %1715 = vmatprep.subr.bf16.mxu0 0
    %1716 = vmatpush2.bf16.msra.mxu0 0
    %1717 = vmatprep.subr.bf16.mxu0 0
    %1718 = vmatpush2.bf16.msra.mxu0 0
    %1719 = vmatprep.subr.bf16.mxu0 0
    %1720 = vmatpush2.bf16.msra.mxu0 0
    %1721 = vmatprep.subr.bf16.mxu0 0
    %1722 = vmatpush2.bf16.msra.mxu0 0
    %1723 = vmatprep.mubr.bf16.mxu0 0
    %1724 = vmatmul.mubr.bf16.gmra.mxu0 %v1626
    %v1725 = vpop.f32.mrf.mxu0
    %v1726 = vadd.f32 0.0, %v1725
    %v1727 = vpop.f32.mrf.mxu0
    %v1728 = vpop.f32.mrf.mxu0
    %v1729 = vadd.f32 0.0, %v1728
    %v1730 = vpop.f32.mrf.mxu0
    %1731 = vdwg.mxu0
    %v1740 = vunpack.c.l.b16 %v1618
    %v1741 = vunpack.c.l.b16 %v1619
    %v1742 = vunpack.c.l.b16 %v1620
    %v1743 = vunpack.c.l.b16 %v1621
    %v1744 = vunpack.c.l.b16 %v1622
    %v1745 = vunpack.c.l.b16 %v1623
    %v1746 = vunpack.c.l.b16 %v1624
    %v1747 = vunpack.c.l.b16 %v1625
    %v1748 = vpack.c.b16 %v1741, %v1740
    %v1749 = vpack.c.b16 %v1743, %v1742
    %v1750 = vpack.c.b16 %v1745, %v1744
    %v1751 = vpack.c.b16 %v1747, %v1746
    %v1757 = vsel %vm303, %v1298, 0
    %1759 = vmatprep.subr.bf16.mxu0 0
    %1760 = vmatpush1.bf16.msra.mxu0 0
    %1761 = vmatprep.subr.bf16.mxu0 0
    %1762 = vmatpush1.bf16.msra.mxu0 0
    %1763 = vmatprep.subr.bf16.mxu0 0
    %1764 = vmatpush1.bf16.msra.mxu0 0
    %1765 = vmatprep.subr.bf16.mxu0 0
    %1766 = vmatpush1.bf16.msra.mxu0 0
    %1767 = vmatprep.subr.bf16.mxu0 0
    %1768 = vmatpush1.bf16.msra.mxu0 %v1751
    %1769 = vmatprep.subr.bf16.mxu0 0
    %1770 = vmatpush1.bf16.msra.mxu0 %v1750
    %1771 = vmatprep.subr.bf16.mxu0 0
    %1772 = vmatpush1.bf16.msra.mxu0 %v1749
    %1773 = vmatprep.subr.bf16.mxu0 0
    %1774 = vmatpush1.bf16.msra.mxu0 %v1748
    %1775 = vmatprep.subr.bf16.mxu0 0
    %1776 = vmatpush2.bf16.msra.mxu0 0
    %1777 = vmatprep.subr.bf16.mxu0 0
    %1778 = vmatpush2.bf16.msra.mxu0 0
    %1779 = vmatprep.subr.bf16.mxu0 0
    %1780 = vmatpush2.bf16.msra.mxu0 0
    %1781 = vmatprep.subr.bf16.mxu0 0
    %1782 = vmatpush2.bf16.msra.mxu0 0
    %1783 = vmatprep.subr.bf16.mxu0 0
    %1784 = vmatpush2.bf16.msra.mxu0 0
    %1785 = vmatprep.subr.bf16.mxu0 0
    %1786 = vmatpush2.bf16.msra.mxu0 0
    %1787 = vmatprep.subr.bf16.mxu0 0
    %1788 = vmatpush2.bf16.msra.mxu0 0
    %1789 = vmatprep.subr.bf16.mxu0 0
    %1790 = vmatpush2.bf16.msra.mxu0 0
    %1791 = vmatprep.mubr.bf16.mxu0 0
    %1792 = vmatmul.mubr.bf16.gmra.mxu0 %v1757
    %v1793 = vpop.f32.mrf.mxu0
    %v1794 = vadd.f32 %v1726, %v1793
    %v1795 = vpop.f32.mrf.mxu0
    %v1796 = vpop.f32.mrf.mxu0
    %v1797 = vadd.f32 %v1729, %v1796
    %v1798 = vpop.f32.mrf.mxu0
    %1799 = vdwg.mxu0
    %v1800 = vld [vmem:[%s9] sm:$0x1]
    %v1802 = vlaneseq
    %v1803 = vshrl.u32 %v1802, 7
    %v1804 = vsub.s32 0, %v1803
    %v1805 = vrot.slane %v1800, %v1804
    %v1807 = vadd.f32 %v1794, %v1805
    %v1808 = vadd.f32 %v1797, %v1805
    %v1809 = vmax.f32 %v1807, 0.0
    %v1810 = vmax.f32 %v1808, 0.0
    %v1811 = vpack.c.bf16 %v1810, %v1809
    %v1812 = vld [vmem:[#allocation9] sm:$0xf]
    %v1813 = vld [vmem:[#allocation9 + $0x4] sm:$0xf]
    %v1814 = vld [vmem:[#allocation9 + $0x8] sm:$0xf]
    %v1815 = vld [vmem:[#allocation9 + $0xc] sm:$0xf]
    %v1816 = vld [vmem:[#allocation9 + $0x10] sm:$0xf]
    %v1817 = vld [vmem:[#allocation9 + $0x14] sm:$0xf]
    %v1818 = vld [vmem:[#allocation9 + $0x18] sm:$0xf]
    %v1819 = vld [vmem:[#allocation9 + $0x1c] sm:$0xf]
    %v1820 = vld [vmem:[%s11] sm:$0x1]
    %v1822 = vlaneseq
    %v1823 = vshrl.u32 %v1822, 7
    %v1824 = vsub.s32 0, %v1823
    %v1825 = vrot.slane %v1820, %v1824
    %v1835 = vunpack.c.l.b16 %v1812
    %v1836 = vunpack.c.l.b16 %v1813
    %v1837 = vunpack.c.l.b16 %v1814
    %v1838 = vunpack.c.l.b16 %v1815
    %v1839 = vunpack.c.l.b16 %v1816
    %v1840 = vunpack.c.l.b16 %v1817
    %v1841 = vunpack.c.l.b16 %v1818
    %v1842 = vunpack.c.l.b16 %v1819
    %v1843 = vpack.c.b16 %v1836, %v1835
    %v1844 = vpack.c.b16 %v1838, %v1837
    %v1845 = vpack.c.b16 %v1840, %v1839
    %v1846 = vpack.c.b16 %v1842, %v1841
    %v1852 = vsel %vm303, %v1811, 0
    %1854 = vmatprep.subr.bf16.mxu0 0
    %1855 = vmatpush1.bf16.msra.mxu0 0
    %1856 = vmatprep.subr.bf16.mxu0 0
    %1857 = vmatpush1.bf16.msra.mxu0 0
    %1858 = vmatprep.subr.bf16.mxu0 0
    %1859 = vmatpush1.bf16.msra.mxu0 0
    %1860 = vmatprep.subr.bf16.mxu0 0
    %1861 = vmatpush1.bf16.msra.mxu0 0
    %1862 = vmatprep.subr.bf16.mxu0 0
    %1863 = vmatpush1.bf16.msra.mxu0 %v1846
    %1864 = vmatprep.subr.bf16.mxu0 0
    %1865 = vmatpush1.bf16.msra.mxu0 %v1845
    %1866 = vmatprep.subr.bf16.mxu0 0
    %1867 = vmatpush1.bf16.msra.mxu0 %v1844
    %1868 = vmatprep.subr.bf16.mxu0 0
    %1869 = vmatpush1.bf16.msra.mxu0 %v1843
    %1870 = vmatprep.subr.bf16.mxu0 0
    %1871 = vmatpush2.bf16.msra.mxu0 0
    %1872 = vmatprep.subr.bf16.mxu0 0
    %1873 = vmatpush2.bf16.msra.mxu0 0
    %1874 = vmatprep.subr.bf16.mxu0 0
    %1875 = vmatpush2.bf16.msra.mxu0 0
    %1876 = vmatprep.subr.bf16.mxu0 0
    %1877 = vmatpush2.bf16.msra.mxu0 0
    %1878 = vmatprep.subr.bf16.mxu0 0
    %1879 = vmatpush2.bf16.msra.mxu0 0
    %1880 = vmatprep.subr.bf16.mxu0 0
    %1881 = vmatpush2.bf16.msra.mxu0 0
    %1882 = vmatprep.subr.bf16.mxu0 0
    %1883 = vmatpush2.bf16.msra.mxu0 0
    %1884 = vmatprep.subr.bf16.mxu0 0
    %1885 = vmatpush2.bf16.msra.mxu0 0
    %1886 = vmatprep.mubr.bf16.mxu0 0
    %1887 = vmatmul.mubr.bf16.gmra.mxu0 %v1852
    %v1888 = vpop.f32.mrf.mxu0
    %v1889 = vadd.f32 %v1825, %v1888
    %v1890 = vpop.f32.mrf.mxu0
    %v1891 = vpop.f32.mrf.mxu0
    %v1892 = vadd.f32 %v1825, %v1891
    %v1893 = vpop.f32.mrf.mxu0
    %1894 = vdwg.mxu0
    %1895 = vst [vmem:[#allocation10] sm:$0xff] %v1889
    %1896 = vst [vmem:[#allocation10 + $0x8] sm:$0xff] %v1892
    // Predicated region
    $region62: #{tpu_custom_call.1} parent=1 // pred_check
      _
    $region63: #{tpu_custom_call.1} parent=1 // pred_check_branch
      %1898 = sbr.rel (0) target = $region65
    $region64: #{tpu_custom_call.1} parent=1 // pred_region
      %s1900 = ssub.s32 256, 256
      %1901 = vsyncadd [#allocation6], %s1900
      %s1902 = sshll.u32 [#allocation10], 4
      %s1903 = int_to_ptr.vmem [resolvable:$true] %s1902
      %1908 = dma.vmem_to_hbm [thread:$0]  %s1903, 256, %s12, [#allocation6], 128, 128, 8
    $region65: #{tpu_custom_call.1} parent=1 // pred_fallthru
      _
    // Predicated region
    $region66: #{tpu_custom_call.1} parent=1 // pred_check
      _
    $region67: #{tpu_custom_call.1} parent=1 // pred_check_branch
      %1910 = sbr.rel (0) target = $region69
    $region68: #{tpu_custom_call.1} parent=1 // pred_region
      %1911 = dma.done [#allocation6], 256
    $region69: #{tpu_custom_call.1} parent=1 // pred_fallthru
      _
    %1912 = vsyncpa [#allocation5], 1
    %1913 = vsyncpa [#allocation8], 1
    %1914 = vsyncpa [#allocation6], 1

</llo_original>
